<compile_context>
chip_gen: v6e
topology: v6e:2x2x1
jax: 0.10.0
libtpu: 0.0.40
codegen_flags: <defaults>
</compile_context>

<pallas_src>
import functools

import jax
import jax.numpy as jnp
from jax.experimental import pallas as pl
from jax.experimental.pallas import tpu as pltpu


def _round_up(x, m):
    return (x + m - 1) // m * m


def vae_kernel(x_ref, eps_ref,
               w1_ref, b1_ref,
               wmuls_ref, bmuls_ref,
               w3_ref, b3_ref,
               w4_ref, b4_ref,
               out_ref, muls_ref,
               *, z_dim):
    # --- encoder fc1: bf16 x bf16 on the MXU, f32 accumulation, then ReLU.
    h = jnp.dot(x_ref[...], w1_ref[...],
                preferred_element_type=jnp.float32) + b1_ref[...]
    h = jnp.maximum(h, 0.0)

    # --- fused mu / log_std head: one tiny f32 matmul, then static slices.
    muls = jnp.dot(h, wmuls_ref[...],
                   preferred_element_type=jnp.float32) + bmuls_ref[...]
    mu = muls[:, :z_dim]
    log_std = muls[:, z_dim:]

    # --- reparametrize (f32 elementwise): z = mu + eps * exp(log_std)
    z = mu + eps_ref[...] * jnp.exp(log_std)

    # --- decoder fc3: K = z_dim is tiny, keep it off the MXU (VPU broadcast FMAs).
    h2 = b3_ref[...]                       # (1, h_dim), broadcasts over batch
    for j in range(z_dim):                 # static unroll, z_dim is small
        h2 = h2 + z[:, j:j + 1] * w3_ref[j:j + 1, :]
    h2 = jnp.maximum(h2, 0.0)

    # --- decoder fc4: bf16 MXU matmul, f32 accumulation; sigmoid via a single
    # tanh transcendental (sigmoid(x) == 0.5*tanh(0.5*x) + 0.5).
    logits = jnp.dot(h2.astype(jnp.bfloat16), w4_ref[...],
                     preferred_element_type=jnp.float32) + b4_ref[...]
    out_ref[...] = 0.5 * jnp.tanh(0.5 * logits) + 0.5

    muls_ref[...] = muls                   # packed [mu | log_std]


def prepare_params(params):
    """One-time, per-model weight prep (call once, not per forward):
    bf16 cast of the two big matrices and fusion of the mu/log_std heads."""
    return dict(
        w1=params["w1"].astype(jnp.bfloat16),
        b1=params["b1"],
        w_muls=jnp.concatenate([params["w_mu"], params["w_ls"]], axis=1),
        b_muls=jnp.concatenate([params["b_mu"], params["b_ls"]], axis=1),
        w3=params["w3"],
        b3=params["b3"],
        w4=params["w4"].astype(jnp.bfloat16),
        b4=params["b4"],
    )


def _pick_batch_tile(B, block_b):
    """Tile so that (a) big batches get >= 2 grid steps (both v7x TCs work),
    (b) the tile is a multiple of 256 when possible (fills the 256-wide MXU),
    (c) small batches use one minimal tile."""
    half = pl.cdiv(B, 2)
    if half >= block_b:
        return block_b
    if half >= 256:
        return _round_up(half, 256)
    return _round_up(max(half, 8), 8)


def vae_forward(x, eps, prepped, *, block_b=512):
    """x: (B, in_dim) f32, eps: (B, z_dim) f32 standard-normal noise.
    `prepped` comes from prepare_params (done once).

    Returns (output, mu, log_std), matching PyTorch VAE.forward semantics
    (eps is supplied by the caller instead of torch.randn_like)."""
    B, in_dim = x.shape
    z_dim = eps.shape[1]
    h_dim = prepped["w1"].shape[1]

    tb = _pick_batch_tile(B, block_b)      # multiple of 8
    b_pad = _round_up(B, tb)

    # bf16 input stream (halves the dominant input HBM flow); pad the batch
    # only if needed (fuses with the cast in XLA). No feature-axis padding.
    x_p = x.astype(jnp.bfloat16)
    eps_p = eps
    if b_pad != B:
        x_p = jnp.pad(x_p, ((0, b_pad - B), (0, 0)))
        eps_p = jnp.pad(eps_p, ((0, b_pad - B), (0, 0)))

    args = (x_p, eps_p,
            prepped["w1"], prepped["b1"],
            prepped["w_muls"], prepped["b_muls"],
            prepped["w3"], prepped["b3"],
            prepped["w4"], prepped["b4"])

    def batch_spec(shape):
        return pl.BlockSpec(shape, lambda i: (i, 0))

    def resident(shape):
        return pl.BlockSpec(shape, lambda i: (0, 0))

    in_specs = [
        batch_spec((tb, in_dim)),          # x (batch tiled, bf16, full 784 lanes)
        batch_spec((tb, z_dim)),           # eps (batch tiled)
        resident((in_dim, h_dim)),         # w1 (bf16, VMEM resident)
        resident((1, h_dim)),              # b1
        resident((h_dim, 2 * z_dim)),      # fused [w_mu | w_ls]
        resident((1, 2 * z_dim)),          # fused [b_mu | b_ls]
        resident((z_dim, h_dim)),          # w3
        resident((1, h_dim)),              # b3
        resident((h_dim, in_dim)),         # w4 (bf16, VMEM resident)
        resident((1, in_dim)),             # b4
    ]
    out_specs = (
        batch_spec((tb, in_dim)),          # reconstruction (f32, full width)
        batch_spec((tb, 2 * z_dim)),       # packed [mu | log_std]
    )

    # Advisory cost estimate (resident weights counted once, not per tile).
    flops = 2 * b_pad * (in_dim * h_dim + h_dim * 2 * z_dim
                         + z_dim * h_dim + h_dim * in_dim)
    weight_bytes = sum(int(a.size) * a.dtype.itemsize for a in args[2:])
    bytes_accessed = (int(x_p.size) * 2 + int(eps_p.size) * 4 + weight_bytes
                      + b_pad * in_dim * 4 + b_pad * 2 * z_dim * 4)
    cost = pl.CostEstimate(flops=flops,
                           transcendentals=b_pad * (z_dim + in_dim),
                           bytes_accessed=bytes_accessed)

    out_p, muls = pl.pallas_call(
        functools.partial(vae_kernel, z_dim=z_dim),
        out_shape=(jax.ShapeDtypeStruct((b_pad, in_dim), jnp.float32),
                   jax.ShapeDtypeStruct((b_pad, 2 * z_dim), jnp.float32)),
        grid=(b_pad // tb,),
        in_specs=in_specs,
        out_specs=out_specs,
        # Batch axis is embarrassingly parallel -> shards across v7x's two
        # TensorCores; no-op on v5e/v6e. 32 MiB scoped VMEM covers tb up to
        # ~1024 and is within physical VMEM on v5e/v6e/v7x.
        compiler_params=pltpu.CompilerParams(
            dimension_semantics=("parallel",),
            vmem_limit_bytes=32 * 1024 * 1024),
        cost_estimate=cost,
    )(*args)

    if b_pad != B:
        out_p = out_p[:B]
        muls = muls[:B]
    mu = muls[:, :z_dim]
    log_std = muls[:, z_dim:]
    return out_p, mu, log_std


def init_params(key, in_dim=784, h_dim=256, z_dim=2):
    """Deterministic init mimicking PyTorch Linear default (uniform +-1/sqrt(fan_in)).
    Weights stored as (in, out)."""
    def linear(k, fan_in, fan_out):
        kw, kb = jax.random.split(k)
        bound = 1.0 / jnp.sqrt(fan_in)
        w = jax.random.uniform(kw, (fan_in, fan_out), jnp.float32, -bound, bound)
        b = jax.random.uniform(kb, (1, fan_out), jnp.float32, -bound, bound)
        return w, b

    k1, k2, k3, k4, k5 = jax.random.split(key, 5)
    w1, b1 = linear(k1, in_dim, h_dim)
    w_mu, b_mu = linear(k2, h_dim, z_dim)
    w_ls, b_ls = linear(k3, h_dim, z_dim)
    w3, b3 = linear(k4, z_dim, h_dim)
    w4, b4 = linear(k5, h_dim, in_dim)
    return dict(w1=w1, b1=b1, w_mu=w_mu, b_mu=b_mu, w_ls=w_ls, b_ls=b_ls,
                w3=w3, b3=b3, w4=w4, b4=b4)


def vae_forward_ref(x, eps, p):
    """Pure-JAX f32 reference for sanity checking."""
    h = jnp.maximum(x @ p["w1"] + p["b1"], 0.0)
    mu = h @ p["w_mu"] + p["b_mu"]
    ls = h @ p["w_ls"] + p["b_ls"]
    z = mu + eps * jnp.exp(ls)
    h2 = jnp.maximum(z @ p["w3"] + p["b3"], 0.0)
    out = jax.nn.sigmoid(h2 @ p["w4"] + p["b4"])
    return out, mu, ls


if __name__ == "__main__":
    in_dim, h_dim, z_dim = 784, 256, 2
    batch = 8

    key = jax.random.PRNGKey(0)
    k_params, k_x, k_eps = jax.random.split(key, 3)

    params = init_params(k_params, in_dim, h_dim, z_dim)
    prepped = prepare_params(params)                                # once, not per call
    x = jax.random.uniform(k_x, (batch, in_dim), jnp.float32)       # MNIST-like input in [0,1)
    eps = jax.random.normal(k_eps, (batch, z_dim), jnp.float32)     # torch.randn_like(std)

    output, mu, log_std = jax.block_until_ready(vae_forward(x, eps, prepped))

    # Cross-check against pure f32 JAX (tolerance loosened for bf16 x / weights).
    out_r, mu_r, ls_r = vae_forward_ref(x, eps, params)
    assert output.shape == (batch, in_dim)
    assert mu.shape == (batch, z_dim) and log_std.shape == (batch, z_dim)
    assert jnp.allclose(output, out_r, atol=2e-2)
    assert jnp.allclose(mu, mu_r, atol=1e-2)
    assert jnp.allclose(log_std, ls_r, atol=1e-2)

    print("KERNEL_OK")
</pallas_src>

<mosaic_0001>
module attributes {stable_mosaic.version = 11 : i64} {
  func.func @vae_kernel(%arg0: i32, %arg1: memref<8x784xbf16, #tpu.memory_space<vmem>>, %arg2: memref<8x2xf32, #tpu.memory_space<vmem>>, %arg3: memref<784x256xbf16, #tpu.memory_space<vmem>>, %arg4: memref<1x256xf32, #tpu.memory_space<vmem>>, %arg5: memref<256x4xf32, #tpu.memory_space<vmem>>, %arg6: memref<1x4xf32, #tpu.memory_space<vmem>>, %arg7: memref<2x256xf32, #tpu.memory_space<vmem>>, %arg8: memref<1x256xf32, #tpu.memory_space<vmem>>, %arg9: memref<256x784xbf16, #tpu.memory_space<vmem>>, %arg10: memref<1x784xf32, #tpu.memory_space<vmem>>, %arg11: memref<8x784xf32, #tpu.memory_space<vmem>>, %arg12: memref<8x4xf32, #tpu.memory_space<vmem>>) attributes {dimension_semantics = [#tpu.dimension_semantics<parallel>], iteration_bounds = array<i64: 1>, scalar_prefetch = 0 : i64, scratch_operands = 0 : i64, tpu.core_type = #tpu.core_type<tc>, window_params = [{transform_indices = @transform_0, window_bounds = array<i64: 8, 784>}, {transform_indices = @transform_1, window_bounds = array<i64: 8, 2>}, {pipeline_mode = #tpu.pipeline_mode<synchronous>, transform_indices = @transform_2, window_bounds = array<i64: 784, 256>}, {pipeline_mode = #tpu.pipeline_mode<synchronous>, transform_indices = @transform_3, window_bounds = array<i64: 1, 256>}, {pipeline_mode = #tpu.pipeline_mode<synchronous>, transform_indices = @transform_4, window_bounds = array<i64: 256, 4>}, {pipeline_mode = #tpu.pipeline_mode<synchronous>, transform_indices = @transform_5, window_bounds = array<i64: 1, 4>}, {pipeline_mode = #tpu.pipeline_mode<synchronous>, transform_indices = @transform_6, window_bounds = array<i64: 2, 256>}, {pipeline_mode = #tpu.pipeline_mode<synchronous>, transform_indices = @transform_7, window_bounds = array<i64: 1, 256>}, {pipeline_mode = #tpu.pipeline_mode<synchronous>, transform_indices = @transform_8, window_bounds = array<i64: 256, 784>}, {pipeline_mode = #tpu.pipeline_mode<synchronous>, transform_indices = @transform_9, window_bounds = array<i64: 1, 784>}, {transform_indices = @transform_10, window_bounds = array<i64: 8, 784>}, {transform_indices = @transform_11, window_bounds = array<i64: 8, 4>}]} {
    %c0 = arith.constant 0 : index
    %c0_0 = arith.constant 0 : index
    %0 = vector.load %arg1[%c0, %c0_0] : memref<8x784xbf16, #tpu.memory_space<vmem>>, vector<8x784xbf16>
    %c0_1 = arith.constant 0 : index
    %c0_2 = arith.constant 0 : index
    %1 = vector.load %arg3[%c0_1, %c0_2] : memref<784x256xbf16, #tpu.memory_space<vmem>>, vector<784x256xbf16>
    %cst = arith.constant dense<0.000000e+00> : vector<8x256xf32>
    %2 = tpu.matmul %0, %1, %cst {dimension_numbers = #tpu.dot_dimension_numbers<[1], [0], [0], [1], [0, 0, 1, 1], [], []>} : vector<8x784xbf16>, vector<784x256xbf16>, vector<8x256xf32> -> vector<8x256xf32>
    %c0_3 = arith.constant 0 : index
    %c0_4 = arith.constant 0 : index
    %3 = vector.load %arg4[%c0_3, %c0_4] : memref<1x256xf32, #tpu.memory_space<vmem>>, vector<1x256xf32>
    %4 = vector.broadcast %3 : vector<1x256xf32> to vector<8x256xf32>
    %5 = arith.addf %2, %4 : vector<8x256xf32>
    %cst_5 = arith.constant 0.000000e+00 : f32
    %6 = vector.broadcast %cst_5 : f32 to vector<8x256xf32>
    %7 = arith.maximumf %5, %6 : vector<8x256xf32>
    %c0_6 = arith.constant 0 : index
    %c0_7 = arith.constant 0 : index
    %8 = vector.load %arg5[%c0_6, %c0_7] : memref<256x4xf32, #tpu.memory_space<vmem>>, vector<256x4xf32>
    %cst_8 = arith.constant dense<0.000000e+00> : vector<8x4xf32>
    %9 = tpu.matmul %7, %8, %cst_8 {dimension_numbers = #tpu.dot_dimension_numbers<[1], [0], [0], [1], [0, 0, 1, 1], [], []>} : vector<8x256xf32>, vector<256x4xf32>, vector<8x4xf32> -> vector<8x4xf32>
    %c0_9 = arith.constant 0 : index
    %c0_10 = arith.constant 0 : index
    %10 = vector.load %arg6[%c0_9, %c0_10] : memref<1x4xf32, #tpu.memory_space<vmem>>, vector<1x4xf32>
    %11 = vector.broadcast %10 : vector<1x4xf32> to vector<8x4xf32>
    %12 = arith.addf %9, %11 : vector<8x4xf32>
    %13 = vector.extract_strided_slice %12 {offsets = [0, 0], sizes = [8, 2], strides = [1, 1]} : vector<8x4xf32> to vector<8x2xf32>
    %14 = vector.extract_strided_slice %12 {offsets = [0, 2], sizes = [8, 2], strides = [1, 1]} : vector<8x4xf32> to vector<8x2xf32>
    %c0_11 = arith.constant 0 : index
    %c0_12 = arith.constant 0 : index
    %15 = vector.load %arg2[%c0_11, %c0_12] : memref<8x2xf32, #tpu.memory_space<vmem>>, vector<8x2xf32>
    %16 = math.exp %14 : vector<8x2xf32>
    %17 = arith.mulf %15, %16 : vector<8x2xf32>
    %18 = arith.addf %13, %17 : vector<8x2xf32>
    %c0_13 = arith.constant 0 : index
    %c0_14 = arith.constant 0 : index
    %19 = vector.load %arg8[%c0_13, %c0_14] : memref<1x256xf32, #tpu.memory_space<vmem>>, vector<1x256xf32>
    %20 = vector.extract_strided_slice %18 {offsets = [0, 0], sizes = [8, 1], strides = [1, 1]} : vector<8x2xf32> to vector<8x1xf32>
    %c0_15 = arith.constant 0 : index
    %c0_16 = arith.constant 0 : index
    %21 = vector.load %arg7[%c0_15, %c0_16] : memref<2x256xf32, #tpu.memory_space<vmem>>, vector<1x256xf32>
    %22 = vector.broadcast %20 : vector<8x1xf32> to vector<8x256xf32>
    %23 = vector.broadcast %21 : vector<1x256xf32> to vector<8x256xf32>
    %24 = arith.mulf %22, %23 : vector<8x256xf32>
    %25 = vector.broadcast %19 : vector<1x256xf32> to vector<8x256xf32>
    %26 = arith.addf %25, %24 : vector<8x256xf32>
    %27 = vector.extract_strided_slice %18 {offsets = [0, 1], sizes = [8, 1], strides = [1, 1]} : vector<8x2xf32> to vector<8x1xf32>
    %c1 = arith.constant 1 : index
    %c0_17 = arith.constant 0 : index
    %28 = vector.load %arg7[%c1, %c0_17] : memref<2x256xf32, #tpu.memory_space<vmem>>, vector<1x256xf32>
    %29 = vector.broadcast %27 : vector<8x1xf32> to vector<8x256xf32>
    %30 = vector.broadcast %28 : vector<1x256xf32> to vector<8x256xf32>
    %31 = arith.mulf %29, %30 : vector<8x256xf32>
    %32 = arith.addf %26, %31 : vector<8x256xf32>
    %cst_18 = arith.constant 0.000000e+00 : f32
    %33 = vector.broadcast %cst_18 : f32 to vector<8x256xf32>
    %34 = arith.maximumf %32, %33 : vector<8x256xf32>
    %35 = arith.truncf %34 : vector<8x256xf32> to vector<8x256xbf16>
    %c0_19 = arith.constant 0 : index
    %c0_20 = arith.constant 0 : index
    %36 = vector.load %arg9[%c0_19, %c0_20] : memref<256x784xbf16, #tpu.memory_space<vmem>>, vector<256x784xbf16>
    %cst_21 = arith.constant dense<0.000000e+00> : vector<8x784xf32>
    %37 = tpu.matmul %35, %36, %cst_21 {dimension_numbers = #tpu.dot_dimension_numbers<[1], [0], [0], [1], [0, 0, 1, 1], [], []>} : vector<8x256xbf16>, vector<256x784xbf16>, vector<8x784xf32> -> vector<8x784xf32>
    %c0_22 = arith.constant 0 : index
    %c0_23 = arith.constant 0 : index
    %38 = vector.load %arg10[%c0_22, %c0_23] : memref<1x784xf32, #tpu.memory_space<vmem>>, vector<1x784xf32>
    %39 = vector.broadcast %38 : vector<1x784xf32> to vector<8x784xf32>
    %40 = arith.addf %37, %39 : vector<8x784xf32>
    %cst_24 = arith.constant 5.000000e-01 : f32
    %41 = vector.broadcast %cst_24 : f32 to vector<8x784xf32>
    %42 = arith.mulf %41, %40 : vector<8x784xf32>
    %43 = math.tanh %42 : vector<8x784xf32>
    %cst_25 = arith.constant 5.000000e-01 : f32
    %44 = vector.broadcast %cst_25 : f32 to vector<8x784xf32>
    %45 = arith.mulf %44, %43 : vector<8x784xf32>
    %cst_26 = arith.constant 5.000000e-01 : f32
    %46 = vector.broadcast %cst_26 : f32 to vector<8x784xf32>
    %47 = arith.addf %45, %46 : vector<8x784xf32>
    %c0_27 = arith.constant 0 : index
    %c0_28 = arith.constant 0 : index
    %48 = vector.load %arg11[%c0_27, %c0_28] : memref<8x784xf32, #tpu.memory_space<vmem>>, vector<8x784xf32>
    tpu.vector_store %arg11[%c0_27, %c0_28], %47 {strides = array<i32>} : memref<8x784xf32, #tpu.memory_space<vmem>>, vector<8x784xf32>,
    %c0_29 = arith.constant 0 : index
    %c0_30 = arith.constant 0 : index
    %49 = vector.load %arg12[%c0_29, %c0_30] : memref<8x4xf32, #tpu.memory_space<vmem>>, vector<8x4xf32>
    tpu.vector_store %arg12[%c0_29, %c0_30], %12 {strides = array<i32>} : memref<8x4xf32, #tpu.memory_space<vmem>>, vector<8x4xf32>,
    return
  }
  func.func @transform_0(%arg0: i32) -> (i32, i32) {
    %c0_i32 = arith.constant 0 : i32
    %c0_i32_0 = arith.constant 0 : i32
    return %arg0, %c0_i32 : i32, i32
  }
  func.func @transform_1(%arg0: i32) -> (i32, i32) {
    %c0_i32 = arith.constant 0 : i32
    %c0_i32_0 = arith.constant 0 : i32
    return %arg0, %c0_i32 : i32, i32
  }
  func.func @transform_2(%arg0: i32) -> (i32, i32) {
    %c0_i32 = arith.constant 0 : i32
    %c0_i32_0 = arith.constant 0 : i32
    %c0_i32_1 = arith.constant 0 : i32
    return %c0_i32, %c0_i32_0 : i32, i32
  }
  func.func @transform_3(%arg0: i32) -> (i32, i32) {
    %c0_i32 = arith.constant 0 : i32
    %c0_i32_0 = arith.constant 0 : i32
    %c0_i32_1 = arith.constant 0 : i32
    return %c0_i32, %c0_i32_0 : i32, i32
  }
  func.func @transform_4(%arg0: i32) -> (i32, i32) {
    %c0_i32 = arith.constant 0 : i32
    %c0_i32_0 = arith.constant 0 : i32
    %c0_i32_1 = arith.constant 0 : i32
    return %c0_i32, %c0_i32_0 : i32, i32
  }
  func.func @transform_5(%arg0: i32) -> (i32, i32) {
    %c0_i32 = arith.constant 0 : i32
    %c0_i32_0 = arith.constant 0 : i32
    %c0_i32_1 = arith.constant 0 : i32
    return %c0_i32, %c0_i32_0 : i32, i32
  }
  func.func @transform_6(%arg0: i32) -> (i32, i32) {
    %c0_i32 = arith.constant 0 : i32
    %c0_i32_0 = arith.constant 0 : i32
    %c0_i32_1 = arith.constant 0 : i32
    return %c0_i32, %c0_i32_0 : i32, i32
  }
  func.func @transform_7(%arg0: i32) -> (i32, i32) {
    %c0_i32 = arith.constant 0 : i32
    %c0_i32_0 = arith.constant 0 : i32
    %c0_i32_1 = arith.constant 0 : i32
    return %c0_i32, %c0_i32_0 : i32, i32
  }
  func.func @transform_8(%arg0: i32) -> (i32, i32) {
    %c0_i32 = arith.constant 0 : i32
    %c0_i32_0 = arith.constant 0 : i32
    %c0_i32_1 = arith.constant 0 : i32
    return %c0_i32, %c0_i32_0 : i32, i32
  }
  func.func @transform_9(%arg0: i32) -> (i32, i32) {
    %c0_i32 = arith.constant 0 : i32
    %c0_i32_0 = arith.constant 0 : i32
    %c0_i32_1 = arith.constant 0 : i32
    return %c0_i32, %c0_i32_0 : i32, i32
  }
  func.func @transform_10(%arg0: i32) -> (i32, i32) {
    %c0_i32 = arith.constant 0 : i32
    %c0_i32_0 = arith.constant 0 : i32
    return %arg0, %c0_i32 : i32, i32
  }
  func.func @transform_11(%arg0: i32) -> (i32, i32) {
    %c0_i32 = arith.constant 0 : i32
    %c0_i32_0 = arith.constant 0 : i32
    return %arg0, %c0_i32 : i32, i32
  }
}

</mosaic_0001>

<llo_original>
// kernel: tpu_custom_call.1
$region0: #{tpu_custom_call.1}
  #allocation0 [shape = 'u32[]', space=smem, size = 0x4, offset = 0x4, fixed_abs, tag = 'smem constant byte address 0x4 - core index']
  #allocation1 [shape = 'u32[144,128]{1,0:T(1,128)}', space=vmem, size = 0x12000, scoped, tag = 'internal scratch']
  %s0 = inlined_call_operand.vmem [shape: bf16[8,784], index: 0, kind: input, shape index: {}]
  %s1 = inlined_call_operand.vmem [shape: f32[8,2], index: 1, kind: input, shape index: {}]
  %s2 = inlined_call_operand.vmem [shape: bf16[784,256], index: 2, kind: input, shape index: {}]
  %s3 = inlined_call_operand.vmem [shape: f32[1,256], index: 3, kind: input, shape index: {}]
  %s4 = inlined_call_operand.vmem [shape: f32[256,4], index: 4, kind: input, shape index: {}]
  %s5 = inlined_call_operand.vmem [shape: f32[1,4], index: 5, kind: input, shape index: {}]
  %s6 = inlined_call_operand.vmem [shape: f32[2,256], index: 6, kind: input, shape index: {}]
  %s7 = inlined_call_operand.vmem [shape: f32[1,256], index: 7, kind: input, shape index: {}]
  %s8 = inlined_call_operand.vmem [shape: bf16[256,784], index: 8, kind: input, shape index: {}]
  %s9 = inlined_call_operand.vmem [shape: f32[1,784], index: 9, kind: input, shape index: {}]
  %s10 = inlined_call_operand.hbm [shape: f32[8,784], index: 10, kind: output, shape index: {0}]
  %s11 = inlined_call_operand.vmem [shape: f32[8,4], index: 11, kind: output, shape index: {1}]
  %12 = xla_tuple %s10, %s11
  %s13 = sld [smem:[#allocation0]]
  $region58: #{tpu_custom_call.1} parent=0
    _
  %s15 = ssub.s32 1, %s13
  %s16 = scalar_select 0, %s15, %s13
  $region1: #{tpu_custom_call.1} parent=0
    #allocation2 [shape = 'u8[28672]{0}', space=vmem, size = 0x7000, scoped, tag = 'output window, operand 0, single buffered']
    #allocation3 [shape = 's32[1]{0}', space=sflag, size = 0x4, scoped, tag = 'scoped memory for tpu_custom_call.1']
    %17 = vsyncpa [#allocation3], 0
    // Predicated region
    $region2: #{tpu_custom_call.1} parent=1 // pred_check
      _
    $region3: #{tpu_custom_call.1} parent=1 // pred_check_branch
      %19 = sbr.rel (0) target = $region5
    $region4: #{tpu_custom_call.1} parent=1 // pred_region
      _
    $region5: #{tpu_custom_call.1} parent=1 // pred_fallthru
      _
    // Predicated region
    $region6: #{tpu_custom_call.1} parent=1 // pred_check
      _
    $region7: #{tpu_custom_call.1} parent=1 // pred_check_branch
      %21 = sbr.rel (0) target = $region9
    $region8: #{tpu_custom_call.1} parent=1 // pred_region
      _
    $region9: #{tpu_custom_call.1} parent=1 // pred_fallthru
      _
    // Predicated region
    $region10: #{tpu_custom_call.1} parent=1 // pred_check
      _
    $region11: #{tpu_custom_call.1} parent=1 // pred_check_branch
      %23 = sbr.rel (0) target = $region13
    $region12: #{tpu_custom_call.1} parent=1 // pred_region
      _
    $region13: #{tpu_custom_call.1} parent=1 // pred_fallthru
      _
    // Predicated region
    $region14: #{tpu_custom_call.1} parent=1 // pred_check
      _
    $region15: #{tpu_custom_call.1} parent=1 // pred_check_branch
      %25 = sbr.rel (0) target = $region17
    $region16: #{tpu_custom_call.1} parent=1 // pred_region
      _
    $region17: #{tpu_custom_call.1} parent=1 // pred_fallthru
      _
    // Predicated region
    $region18: #{tpu_custom_call.1} parent=1 // pred_check
      _
    $region19: #{tpu_custom_call.1} parent=1 // pred_check_branch
      %27 = sbr.rel (0) target = $region21
    $region20: #{tpu_custom_call.1} parent=1 // pred_region
      _
    $region21: #{tpu_custom_call.1} parent=1 // pred_fallthru
      _
    // Predicated region
    $region22: #{tpu_custom_call.1} parent=1 // pred_check
      _
    $region23: #{tpu_custom_call.1} parent=1 // pred_check_branch
      %29 = sbr.rel (0) target = $region25
    $region24: #{tpu_custom_call.1} parent=1 // pred_region
      _
    $region25: #{tpu_custom_call.1} parent=1 // pred_fallthru
      _
    // Predicated region
    $region26: #{tpu_custom_call.1} parent=1 // pred_check
      _
    $region27: #{tpu_custom_call.1} parent=1 // pred_check_branch
      %31 = sbr.rel (0) target = $region29
    $region28: #{tpu_custom_call.1} parent=1 // pred_region
      _
    $region29: #{tpu_custom_call.1} parent=1 // pred_fallthru
      _
    // Predicated region
    $region30: #{tpu_custom_call.1} parent=1 // pred_check
      _
    $region31: #{tpu_custom_call.1} parent=1 // pred_check_branch
      %33 = sbr.rel (0) target = $region33
    $region32: #{tpu_custom_call.1} parent=1 // pred_region
      _
    $region33: #{tpu_custom_call.1} parent=1 // pred_fallthru
      _
    // Predicated region
    $region34: #{tpu_custom_call.1} parent=1 // pred_check
      _
    $region35: #{tpu_custom_call.1} parent=1 // pred_check_branch
      %35 = sbr.rel (0) target = $region37
    $region36: #{tpu_custom_call.1} parent=1 // pred_region
      _
    $region37: #{tpu_custom_call.1} parent=1 // pred_fallthru
      _
    // Predicated region
    $region38: #{tpu_custom_call.1} parent=1 // pred_check
      _
    $region39: #{tpu_custom_call.1} parent=1 // pred_check_branch
      %37 = sbr.rel (0) target = $region41
    $region40: #{tpu_custom_call.1} parent=1 // pred_region
      _
    $region41: #{tpu_custom_call.1} parent=1 // pred_fallthru
      _
    %v39 = vld [vmem:[%s0] sm:$0xff]
    %v40 = vld [vmem:[%s0 + $0x8] sm:$0xff]
    %v41 = vld [vmem:[%s0 + $0x10] sm:$0xff]
    %v42 = vld [vmem:[%s0 + $0x18] sm:$0xf]
    %v43 = vld [vmem:[%s2] sm:$0xff]
    %v44 = vld [vmem:[%s2 + $0x8] sm:$0xff]
    %v45 = vld [vmem:[%s2 + $0x10] sm:$0xff]
    %v46 = vld [vmem:[%s2 + $0x18] sm:$0xff]
    %v47 = vld [vmem:[%s2 + $0x20] sm:$0xff]
    %v48 = vld [vmem:[%s2 + $0x28] sm:$0xff]
    %v49 = vld [vmem:[%s2 + $0x30] sm:$0xff]
    %v50 = vld [vmem:[%s2 + $0x38] sm:$0xff]
    %v51 = vld [vmem:[%s2 + $0x40] sm:$0xff]
    %v52 = vld [vmem:[%s2 + $0x48] sm:$0xff]
    %v53 = vld [vmem:[%s2 + $0x50] sm:$0xff]
    %v54 = vld [vmem:[%s2 + $0x58] sm:$0xff]
    %v55 = vld [vmem:[%s2 + $0x60] sm:$0xff]
    %v56 = vld [vmem:[%s2 + $0x68] sm:$0xff]
    %v57 = vld [vmem:[%s2 + $0x70] sm:$0xff]
    %v58 = vld [vmem:[%s2 + $0x78] sm:$0xff]
    %v59 = vld [vmem:[%s2 + $0x80] sm:$0xff]
    %v60 = vld [vmem:[%s2 + $0x88] sm:$0xff]
    %v61 = vld [vmem:[%s2 + $0x90] sm:$0xff]
    %v62 = vld [vmem:[%s2 + $0x98] sm:$0xff]
    %v63 = vld [vmem:[%s2 + $0xa0] sm:$0xff]
    %v64 = vld [vmem:[%s2 + $0xa8] sm:$0xff]
    %v65 = vld [vmem:[%s2 + $0xb0] sm:$0xff]
    %v66 = vld [vmem:[%s2 + $0xb8] sm:$0xff]
    %v67 = vld [vmem:[%s2 + $0xc0] sm:$0xff]
    %v68 = vld [vmem:[%s2 + $0xc8] sm:$0xff]
    %v69 = vld [vmem:[%s2 + $0xd0] sm:$0xff]
    %v70 = vld [vmem:[%s2 + $0xd8] sm:$0xff]
    %v71 = vld [vmem:[%s2 + $0xe0] sm:$0xff]
    %v72 = vld [vmem:[%s2 + $0xe8] sm:$0xff]
    %v73 = vld [vmem:[%s2 + $0xf0] sm:$0xff]
    %v74 = vld [vmem:[%s2 + $0xf8] sm:$0xff]
    %v75 = vld [vmem:[%s2 + $0x100] sm:$0xff]
    %v76 = vld [vmem:[%s2 + $0x108] sm:$0xff]
    %v77 = vld [vmem:[%s2 + $0x110] sm:$0xff]
    %v78 = vld [vmem:[%s2 + $0x118] sm:$0xff]
    %v79 = vld [vmem:[%s2 + $0x120] sm:$0xff]
    %v80 = vld [vmem:[%s2 + $0x128] sm:$0xff]
    %v81 = vld [vmem:[%s2 + $0x130] sm:$0xff]
    %v82 = vld [vmem:[%s2 + $0x138] sm:$0xff]
    %v83 = vld [vmem:[%s2 + $0x140] sm:$0xff]
    %v84 = vld [vmem:[%s2 + $0x148] sm:$0xff]
    %v85 = vld [vmem:[%s2 + $0x150] sm:$0xff]
    %v86 = vld [vmem:[%s2 + $0x158] sm:$0xff]
    %v87 = vld [vmem:[%s2 + $0x160] sm:$0xff]
    %v88 = vld [vmem:[%s2 + $0x168] sm:$0xff]
    %v89 = vld [vmem:[%s2 + $0x170] sm:$0xff]
    %v90 = vld [vmem:[%s2 + $0x178] sm:$0xff]
    %v91 = vld [vmem:[%s2 + $0x180] sm:$0xff]
    %v92 = vld [vmem:[%s2 + $0x188] sm:$0xff]
    %v93 = vld [vmem:[%s2 + $0x190] sm:$0xff]
    %v94 = vld [vmem:[%s2 + $0x198] sm:$0xff]
    %v95 = vld [vmem:[%s2 + $0x1a0] sm:$0xff]
    %v96 = vld [vmem:[%s2 + $0x1a8] sm:$0xff]
    %v97 = vld [vmem:[%s2 + $0x1b0] sm:$0xff]
    %v98 = vld [vmem:[%s2 + $0x1b8] sm:$0xff]
    %v99 = vld [vmem:[%s2 + $0x1c0] sm:$0xff]
    %v100 = vld [vmem:[%s2 + $0x1c8] sm:$0xff]
    %v101 = vld [vmem:[%s2 + $0x1d0] sm:$0xff]
    %v102 = vld [vmem:[%s2 + $0x1d8] sm:$0xff]
    %v103 = vld [vmem:[%s2 + $0x1e0] sm:$0xff]
    %v104 = vld [vmem:[%s2 + $0x1e8] sm:$0xff]
    %v105 = vld [vmem:[%s2 + $0x1f0] sm:$0xff]
    %v106 = vld [vmem:[%s2 + $0x1f8] sm:$0xff]
    %v107 = vld [vmem:[%s2 + $0x200] sm:$0xff]
    %v108 = vld [vmem:[%s2 + $0x208] sm:$0xff]
    %v109 = vld [vmem:[%s2 + $0x210] sm:$0xff]
    %v110 = vld [vmem:[%s2 + $0x218] sm:$0xff]
    %v111 = vld [vmem:[%s2 + $0x220] sm:$0xff]
    %v112 = vld [vmem:[%s2 + $0x228] sm:$0xff]
    %v113 = vld [vmem:[%s2 + $0x230] sm:$0xff]
    %v114 = vld [vmem:[%s2 + $0x238] sm:$0xff]
    %v115 = vld [vmem:[%s2 + $0x240] sm:$0xff]
    %v116 = vld [vmem:[%s2 + $0x248] sm:$0xff]
    %v117 = vld [vmem:[%s2 + $0x250] sm:$0xff]
    %v118 = vld [vmem:[%s2 + $0x258] sm:$0xff]
    %v119 = vld [vmem:[%s2 + $0x260] sm:$0xff]
    %v120 = vld [vmem:[%s2 + $0x268] sm:$0xff]
    %v121 = vld [vmem:[%s2 + $0x270] sm:$0xff]
    %v122 = vld [vmem:[%s2 + $0x278] sm:$0xff]
    %v123 = vld [vmem:[%s2 + $0x280] sm:$0xff]
    %v124 = vld [vmem:[%s2 + $0x288] sm:$0xff]
    %v125 = vld [vmem:[%s2 + $0x290] sm:$0xff]
    %v126 = vld [vmem:[%s2 + $0x298] sm:$0xff]
    %v127 = vld [vmem:[%s2 + $0x2a0] sm:$0xff]
    %v128 = vld [vmem:[%s2 + $0x2a8] sm:$0xff]
    %v129 = vld [vmem:[%s2 + $0x2b0] sm:$0xff]
    %v130 = vld [vmem:[%s2 + $0x2b8] sm:$0xff]
    %v131 = vld [vmem:[%s2 + $0x2c0] sm:$0xff]
    %v132 = vld [vmem:[%s2 + $0x2c8] sm:$0xff]
    %v133 = vld [vmem:[%s2 + $0x2d0] sm:$0xff]
    %v134 = vld [vmem:[%s2 + $0x2d8] sm:$0xff]
    %v135 = vld [vmem:[%s2 + $0x2e0] sm:$0xff]
    %v136 = vld [vmem:[%s2 + $0x2e8] sm:$0xff]
    %v137 = vld [vmem:[%s2 + $0x2f0] sm:$0xff]
    %v138 = vld [vmem:[%s2 + $0x2f8] sm:$0xff]
    %v139 = vld [vmem:[%s2 + $0x300] sm:$0xff]
    %v140 = vld [vmem:[%s2 + $0x308] sm:$0xff]
    %v141 = vld [vmem:[%s3] sm:$0x3]
    %v143 = vlaneseq
    %v144 = vshrl.u32 %v143, 7
    %v145 = vsub.s32 0, %v144
    %v146 = vrot.slane %v141, %v145
    %v147 = vlaneseq
    %v148 = vshrl.u32 %v147, 7
    %v149 = vsub.s32 1, %v148
    %v150 = vrot.slane %v141, %v149
    %v157 = vunpack.c.l.b16 %v39
    %v158 = vunpack.c.h.b16 %v39
    %v159 = vunpack.c.l.b16 %v40
    %v160 = vunpack.c.h.b16 %v40
    %v161 = vunpack.c.l.b16 %v41
    %v162 = vunpack.c.h.b16 %v41
    %v163 = vunpack.c.l.b16 %v42
    %v164 = vpack.c.b16 %v157, %v157
    %v165 = vpack.c.b16 %v158, %v158
    %v166 = vpack.c.b16 %v159, %v159
    %v167 = vpack.c.b16 %v160, %v160
    %v168 = vpack.c.b16 %v161, %v161
    %v169 = vpack.c.b16 %v162, %v162
    %v170 = vpack.c.b16 %v163, %v163
    %v275 = vunpack.c.l.b16 %v43
    %v276 = vunpack.c.h.b16 %v43
    %v277 = vunpack.c.l.b16 %v44
    %v278 = vunpack.c.h.b16 %v44
    %v279 = vunpack.c.l.b16 %v45
    %v280 = vunpack.c.h.b16 %v45
    %v281 = vunpack.c.l.b16 %v46
    %v282 = vunpack.c.h.b16 %v46
    %v283 = vunpack.c.l.b16 %v47
    %v284 = vunpack.c.h.b16 %v47
    %v285 = vunpack.c.l.b16 %v48
    %v286 = vunpack.c.h.b16 %v48
    %v287 = vunpack.c.l.b16 %v49
    %v288 = vunpack.c.h.b16 %v49
    %v289 = vunpack.c.l.b16 %v50
    %v290 = vunpack.c.h.b16 %v50
    %v291 = vunpack.c.l.b16 %v51
    %v292 = vunpack.c.h.b16 %v51
    %v293 = vunpack.c.l.b16 %v52
    %v294 = vunpack.c.h.b16 %v52
    %v295 = vunpack.c.l.b16 %v53
    %v296 = vunpack.c.h.b16 %v53
    %v297 = vunpack.c.l.b16 %v54
    %v298 = vunpack.c.h.b16 %v54
    %v299 = vunpack.c.l.b16 %v55
    %v300 = vunpack.c.h.b16 %v55
    %v301 = vunpack.c.l.b16 %v56
    %v302 = vunpack.c.h.b16 %v56
    %v303 = vunpack.c.l.b16 %v57
    %v304 = vunpack.c.h.b16 %v57
    %v305 = vunpack.c.l.b16 %v58
    %v306 = vunpack.c.h.b16 %v58
    %v307 = vunpack.c.l.b16 %v59
    %v308 = vunpack.c.h.b16 %v59
    %v309 = vunpack.c.l.b16 %v60
    %v310 = vunpack.c.h.b16 %v60
    %v311 = vunpack.c.l.b16 %v61
    %v312 = vunpack.c.h.b16 %v61
    %v313 = vunpack.c.l.b16 %v62
    %v314 = vunpack.c.h.b16 %v62
    %v315 = vunpack.c.l.b16 %v63
    %v316 = vunpack.c.h.b16 %v63
    %v317 = vunpack.c.l.b16 %v64
    %v318 = vunpack.c.h.b16 %v64
    %v319 = vunpack.c.l.b16 %v65
    %v320 = vunpack.c.h.b16 %v65
    %v321 = vunpack.c.l.b16 %v66
    %v322 = vunpack.c.h.b16 %v66
    %v323 = vunpack.c.l.b16 %v67
    %v324 = vunpack.c.h.b16 %v67
    %v325 = vunpack.c.l.b16 %v68
    %v326 = vunpack.c.h.b16 %v68
    %v327 = vunpack.c.l.b16 %v69
    %v328 = vunpack.c.h.b16 %v69
    %v329 = vunpack.c.l.b16 %v70
    %v330 = vunpack.c.h.b16 %v70
    %v331 = vunpack.c.l.b16 %v71
    %v332 = vunpack.c.h.b16 %v71
    %v333 = vunpack.c.l.b16 %v72
    %v334 = vunpack.c.h.b16 %v72
    %v335 = vunpack.c.l.b16 %v73
    %v336 = vunpack.c.h.b16 %v73
    %v337 = vunpack.c.l.b16 %v74
    %v338 = vunpack.c.h.b16 %v74
    %v339 = vunpack.c.l.b16 %v75
    %v340 = vunpack.c.h.b16 %v75
    %v341 = vunpack.c.l.b16 %v76
    %v342 = vunpack.c.h.b16 %v76
    %v343 = vunpack.c.l.b16 %v77
    %v344 = vunpack.c.h.b16 %v77
    %v345 = vunpack.c.l.b16 %v78
    %v346 = vunpack.c.h.b16 %v78
    %v347 = vunpack.c.l.b16 %v79
    %v348 = vunpack.c.h.b16 %v79
    %v349 = vunpack.c.l.b16 %v80
    %v350 = vunpack.c.h.b16 %v80
    %v351 = vunpack.c.l.b16 %v81
    %v352 = vunpack.c.h.b16 %v81
    %v353 = vunpack.c.l.b16 %v82
    %v354 = vunpack.c.h.b16 %v82
    %v355 = vunpack.c.l.b16 %v83
    %v356 = vunpack.c.h.b16 %v83
    %v357 = vunpack.c.l.b16 %v84
    %v358 = vunpack.c.h.b16 %v84
    %v359 = vunpack.c.l.b16 %v85
    %v360 = vunpack.c.h.b16 %v85
    %v361 = vunpack.c.l.b16 %v86
    %v362 = vunpack.c.h.b16 %v86
    %v363 = vunpack.c.l.b16 %v87
    %v364 = vunpack.c.h.b16 %v87
    %v365 = vunpack.c.l.b16 %v88
    %v366 = vunpack.c.h.b16 %v88
    %v367 = vunpack.c.l.b16 %v89
    %v368 = vunpack.c.h.b16 %v89
    %v369 = vunpack.c.l.b16 %v90
    %v370 = vunpack.c.h.b16 %v90
    %v371 = vunpack.c.l.b16 %v91
    %v372 = vunpack.c.h.b16 %v91
    %v373 = vunpack.c.l.b16 %v92
    %v374 = vunpack.c.h.b16 %v92
    %v375 = vunpack.c.l.b16 %v93
    %v376 = vunpack.c.h.b16 %v93
    %v377 = vunpack.c.l.b16 %v94
    %v378 = vunpack.c.h.b16 %v94
    %v379 = vunpack.c.l.b16 %v95
    %v380 = vunpack.c.h.b16 %v95
    %v381 = vunpack.c.l.b16 %v96
    %v382 = vunpack.c.h.b16 %v96
    %v383 = vunpack.c.l.b16 %v97
    %v384 = vunpack.c.h.b16 %v97
    %v385 = vunpack.c.l.b16 %v98
    %v386 = vunpack.c.h.b16 %v98
    %v387 = vunpack.c.l.b16 %v99
    %v388 = vunpack.c.h.b16 %v99
    %v389 = vunpack.c.l.b16 %v100
    %v390 = vunpack.c.h.b16 %v100
    %v391 = vunpack.c.l.b16 %v101
    %v392 = vunpack.c.h.b16 %v101
    %v393 = vunpack.c.l.b16 %v102
    %v394 = vunpack.c.h.b16 %v102
    %v395 = vunpack.c.l.b16 %v103
    %v396 = vunpack.c.h.b16 %v103
    %v397 = vunpack.c.l.b16 %v104
    %v398 = vunpack.c.h.b16 %v104
    %v399 = vunpack.c.l.b16 %v105
    %v400 = vunpack.c.h.b16 %v105
    %v401 = vunpack.c.l.b16 %v106
    %v402 = vunpack.c.h.b16 %v106
    %v403 = vunpack.c.l.b16 %v107
    %v404 = vunpack.c.h.b16 %v107
    %v405 = vunpack.c.l.b16 %v108
    %v406 = vunpack.c.h.b16 %v108
    %v407 = vunpack.c.l.b16 %v109
    %v408 = vunpack.c.h.b16 %v109
    %v409 = vunpack.c.l.b16 %v110
    %v410 = vunpack.c.h.b16 %v110
    %v411 = vunpack.c.l.b16 %v111
    %v412 = vunpack.c.h.b16 %v111
    %v413 = vunpack.c.l.b16 %v112
    %v414 = vunpack.c.h.b16 %v112
    %v415 = vunpack.c.l.b16 %v113
    %v416 = vunpack.c.h.b16 %v113
    %v417 = vunpack.c.l.b16 %v114
    %v418 = vunpack.c.h.b16 %v114
    %v419 = vunpack.c.l.b16 %v115
    %v420 = vunpack.c.h.b16 %v115
    %v421 = vunpack.c.l.b16 %v116
    %v422 = vunpack.c.h.b16 %v116
    %v423 = vunpack.c.l.b16 %v117
    %v424 = vunpack.c.h.b16 %v117
    %v425 = vunpack.c.l.b16 %v118
    %v426 = vunpack.c.h.b16 %v118
    %v427 = vunpack.c.l.b16 %v119
    %v428 = vunpack.c.h.b16 %v119
    %v429 = vunpack.c.l.b16 %v120
    %v430 = vunpack.c.h.b16 %v120
    %v431 = vunpack.c.l.b16 %v121
    %v432 = vunpack.c.h.b16 %v121
    %v433 = vunpack.c.l.b16 %v122
    %v434 = vunpack.c.h.b16 %v122
    %v435 = vunpack.c.l.b16 %v123
    %v436 = vunpack.c.h.b16 %v123
    %v437 = vunpack.c.l.b16 %v124
    %v438 = vunpack.c.h.b16 %v124
    %v439 = vunpack.c.l.b16 %v125
    %v440 = vunpack.c.h.b16 %v125
    %v441 = vunpack.c.l.b16 %v126
    %v442 = vunpack.c.h.b16 %v126
    %v443 = vunpack.c.l.b16 %v127
    %v444 = vunpack.c.h.b16 %v127
    %v445 = vunpack.c.l.b16 %v128
    %v446 = vunpack.c.h.b16 %v128
    %v447 = vunpack.c.l.b16 %v129
    %v448 = vunpack.c.h.b16 %v129
    %v449 = vunpack.c.l.b16 %v130
    %v450 = vunpack.c.h.b16 %v130
    %v451 = vunpack.c.l.b16 %v131
    %v452 = vunpack.c.h.b16 %v131
    %v453 = vunpack.c.l.b16 %v132
    %v454 = vunpack.c.h.b16 %v132
    %v455 = vunpack.c.l.b16 %v133
    %v456 = vunpack.c.h.b16 %v133
    %v457 = vunpack.c.l.b16 %v134
    %v458 = vunpack.c.h.b16 %v134
    %v459 = vunpack.c.l.b16 %v135
    %v460 = vunpack.c.h.b16 %v135
    %v461 = vunpack.c.l.b16 %v136
    %v462 = vunpack.c.h.b16 %v136
    %v463 = vunpack.c.l.b16 %v137
    %v464 = vunpack.c.h.b16 %v137
    %v465 = vunpack.c.l.b16 %v138
    %v466 = vunpack.c.h.b16 %v138
    %v467 = vunpack.c.l.b16 %v139
    %v468 = vunpack.c.h.b16 %v139
    %v469 = vunpack.c.l.b16 %v140
    %v470 = vunpack.c.h.b16 %v140
    %v471 = vpack.c.b16 %v277, %v275
    %v472 = vpack.c.b16 %v278, %v276
    %v473 = vpack.c.b16 %v281, %v279
    %v474 = vpack.c.b16 %v282, %v280
    %v475 = vpack.c.b16 %v285, %v283
    %v476 = vpack.c.b16 %v286, %v284
    %v477 = vpack.c.b16 %v289, %v287
    %v478 = vpack.c.b16 %v290, %v288
    %v479 = vpack.c.b16 %v293, %v291
    %v480 = vpack.c.b16 %v294, %v292
    %v481 = vpack.c.b16 %v297, %v295
    %v482 = vpack.c.b16 %v298, %v296
    %v483 = vpack.c.b16 %v301, %v299
    %v484 = vpack.c.b16 %v302, %v300
    %v485 = vpack.c.b16 %v305, %v303
    %v486 = vpack.c.b16 %v306, %v304
    %v487 = vpack.c.b16 %v309, %v307
    %v488 = vpack.c.b16 %v310, %v308
    %v489 = vpack.c.b16 %v313, %v311
    %v490 = vpack.c.b16 %v314, %v312
    %v491 = vpack.c.b16 %v317, %v315
    %v492 = vpack.c.b16 %v318, %v316
    %v493 = vpack.c.b16 %v321, %v319
    %v494 = vpack.c.b16 %v322, %v320
    %v495 = vpack.c.b16 %v325, %v323
    %v496 = vpack.c.b16 %v326, %v324
    %v497 = vpack.c.b16 %v329, %v327
    %v498 = vpack.c.b16 %v330, %v328
    %v499 = vpack.c.b16 %v333, %v331
    %v500 = vpack.c.b16 %v334, %v332
    %v501 = vpack.c.b16 %v337, %v335
    %v502 = vpack.c.b16 %v338, %v336
    %v503 = vpack.c.b16 %v341, %v339
    %v504 = vpack.c.b16 %v342, %v340
    %v505 = vpack.c.b16 %v345, %v343
    %v506 = vpack.c.b16 %v346, %v344
    %v507 = vpack.c.b16 %v349, %v347
    %v508 = vpack.c.b16 %v350, %v348
    %v509 = vpack.c.b16 %v353, %v351
    %v510 = vpack.c.b16 %v354, %v352
    %v511 = vpack.c.b16 %v357, %v355
    %v512 = vpack.c.b16 %v358, %v356
    %v513 = vpack.c.b16 %v361, %v359
    %v514 = vpack.c.b16 %v362, %v360
    %v515 = vpack.c.b16 %v365, %v363
    %v516 = vpack.c.b16 %v366, %v364
    %v517 = vpack.c.b16 %v369, %v367
    %v518 = vpack.c.b16 %v370, %v368
    %v519 = vpack.c.b16 %v373, %v371
    %v520 = vpack.c.b16 %v374, %v372
    %v521 = vpack.c.b16 %v377, %v375
    %v522 = vpack.c.b16 %v378, %v376
    %v523 = vpack.c.b16 %v381, %v379
    %v524 = vpack.c.b16 %v382, %v380
    %v525 = vpack.c.b16 %v385, %v383
    %v526 = vpack.c.b16 %v386, %v384
    %v527 = vpack.c.b16 %v389, %v387
    %v528 = vpack.c.b16 %v390, %v388
    %v529 = vpack.c.b16 %v393, %v391
    %v530 = vpack.c.b16 %v394, %v392
    %v531 = vpack.c.b16 %v397, %v395
    %v532 = vpack.c.b16 %v398, %v396
    %v533 = vpack.c.b16 %v401, %v399
    %v534 = vpack.c.b16 %v402, %v400
    %v535 = vpack.c.b16 %v405, %v403
    %v536 = vpack.c.b16 %v406, %v404
    %v537 = vpack.c.b16 %v409, %v407
    %v538 = vpack.c.b16 %v410, %v408
    %v539 = vpack.c.b16 %v413, %v411
    %v540 = vpack.c.b16 %v414, %v412
    %v541 = vpack.c.b16 %v417, %v415
    %v542 = vpack.c.b16 %v418, %v416
    %v543 = vpack.c.b16 %v421, %v419
    %v544 = vpack.c.b16 %v422, %v420
    %v545 = vpack.c.b16 %v425, %v423
    %v546 = vpack.c.b16 %v426, %v424
    %v547 = vpack.c.b16 %v429, %v427
    %v548 = vpack.c.b16 %v430, %v428
    %v549 = vpack.c.b16 %v433, %v431
    %v550 = vpack.c.b16 %v434, %v432
    %v551 = vpack.c.b16 %v437, %v435
    %v552 = vpack.c.b16 %v438, %v436
    %v553 = vpack.c.b16 %v441, %v439
    %v554 = vpack.c.b16 %v442, %v440
    %v555 = vpack.c.b16 %v445, %v443
    %v556 = vpack.c.b16 %v446, %v444
    %v557 = vpack.c.b16 %v449, %v447
    %v558 = vpack.c.b16 %v450, %v448
    %v559 = vpack.c.b16 %v453, %v451
    %v560 = vpack.c.b16 %v454, %v452
    %v561 = vpack.c.b16 %v457, %v455
    %v562 = vpack.c.b16 %v458, %v456
    %v563 = vpack.c.b16 %v461, %v459
    %v564 = vpack.c.b16 %v462, %v460
    %v565 = vpack.c.b16 %v465, %v463
    %v566 = vpack.c.b16 %v466, %v464
    %v567 = vpack.c.b16 %v469, %v467
    %v568 = vpack.c.b16 %v470, %v468
    %vm667 = vcmask 130048
    %v669 = vsel %vm667, %v170, 0
    %671 = vmatprep.subr.bf16.mxu0 %v486
    %672 = vmatpush1.bf16.msra.mxu0 %v485
    %673 = vmatprep.subr.bf16.mxu0 %v484
    %674 = vmatpush1.bf16.msra.mxu0 %v483
    %675 = vmatprep.subr.bf16.mxu0 %v482
    %676 = vmatpush1.bf16.msra.mxu0 %v481
    %677 = vmatprep.subr.bf16.mxu0 %v480
    %678 = vmatpush1.bf16.msra.mxu0 %v479
    %679 = vmatprep.subr.bf16.mxu0 %v478
    %680 = vmatpush1.bf16.msra.mxu0 %v477
    %681 = vmatprep.subr.bf16.mxu0 %v476
    %682 = vmatpush1.bf16.msra.mxu0 %v475
    %683 = vmatprep.subr.bf16.mxu0 %v474
    %684 = vmatpush1.bf16.msra.mxu0 %v473
    %685 = vmatprep.subr.bf16.mxu0 %v472
    %686 = vmatpush1.bf16.msra.mxu0 %v471
    %687 = vmatprep.subr.bf16.mxu0 %v502
    %688 = vmatpush2.bf16.msra.mxu0 %v501
    %689 = vmatprep.subr.bf16.mxu0 %v500
    %690 = vmatpush2.bf16.msra.mxu0 %v499
    %691 = vmatprep.subr.bf16.mxu0 %v498
    %692 = vmatpush2.bf16.msra.mxu0 %v497
    %693 = vmatprep.subr.bf16.mxu0 %v496
    %694 = vmatpush2.bf16.msra.mxu0 %v495
    %695 = vmatprep.subr.bf16.mxu0 %v494
    %696 = vmatpush2.bf16.msra.mxu0 %v493
    %697 = vmatprep.subr.bf16.mxu0 %v492
    %698 = vmatpush2.bf16.msra.mxu0 %v491
    %699 = vmatprep.subr.bf16.mxu0 %v490
    %700 = vmatpush2.bf16.msra.mxu0 %v489
    %701 = vmatprep.subr.bf16.mxu0 %v488
    %702 = vmatpush2.bf16.msra.mxu0 %v487
    %703 = vmatprep.mubr.bf16.mxu0 %v165
    %704 = vmatmul.mubr.bf16.gmra.mxu0 %v164
    %v705 = vpop.f32.mrf.mxu0
    %v706 = vadd.f32 %v146, %v705
    %v707 = vpop.f32.mrf.mxu0
    %v708 = vadd.f32 %v150, %v707
    %v709 = vpop.f32.mrf.mxu0
    %v710 = vpop.f32.mrf.mxu0
    %711 = vdwg.mxu0
    %712 = vmatprep.subr.bf16.mxu0 %v518
    %713 = vmatpush1.bf16.msra.mxu0 %v517
    %714 = vmatprep.subr.bf16.mxu0 %v516
    %715 = vmatpush1.bf16.msra.mxu0 %v515
    %716 = vmatprep.subr.bf16.mxu0 %v514
    %717 = vmatpush1.bf16.msra.mxu0 %v513
    %718 = vmatprep.subr.bf16.mxu0 %v512
    %719 = vmatpush1.bf16.msra.mxu0 %v511
    %720 = vmatprep.subr.bf16.mxu0 %v510
    %721 = vmatpush1.bf16.msra.mxu0 %v509
    %722 = vmatprep.subr.bf16.mxu0 %v508
    %723 = vmatpush1.bf16.msra.mxu0 %v507
    %724 = vmatprep.subr.bf16.mxu0 %v506
    %725 = vmatpush1.bf16.msra.mxu0 %v505
    %726 = vmatprep.subr.bf16.mxu0 %v504
    %727 = vmatpush1.bf16.msra.mxu0 %v503
    %728 = vmatprep.subr.bf16.mxu0 %v534
    %729 = vmatpush2.bf16.msra.mxu0 %v533
    %730 = vmatprep.subr.bf16.mxu0 %v532
    %731 = vmatpush2.bf16.msra.mxu0 %v531
    %732 = vmatprep.subr.bf16.mxu0 %v530
    %733 = vmatpush2.bf16.msra.mxu0 %v529
    %734 = vmatprep.subr.bf16.mxu0 %v528
    %735 = vmatpush2.bf16.msra.mxu0 %v527
    %736 = vmatprep.subr.bf16.mxu0 %v526
    %737 = vmatpush2.bf16.msra.mxu0 %v525
    %738 = vmatprep.subr.bf16.mxu0 %v524
    %739 = vmatpush2.bf16.msra.mxu0 %v523
    %740 = vmatprep.subr.bf16.mxu0 %v522
    %741 = vmatpush2.bf16.msra.mxu0 %v521
    %742 = vmatprep.subr.bf16.mxu0 %v520
    %743 = vmatpush2.bf16.msra.mxu0 %v519
    %744 = vmatprep.mubr.bf16.mxu0 %v167
    %745 = vmatmul.mubr.bf16.gmra.mxu0 %v166
    %v746 = vpop.f32.mrf.mxu0
    %v747 = vadd.f32 %v706, %v746
    %v748 = vpop.f32.mrf.mxu0
    %v749 = vadd.f32 %v708, %v748
    %v750 = vpop.f32.mrf.mxu0
    %v751 = vpop.f32.mrf.mxu0
    %752 = vdwg.mxu0
    %753 = vmatprep.subr.bf16.mxu0 %v550
    %754 = vmatpush1.bf16.msra.mxu0 %v549
    %755 = vmatprep.subr.bf16.mxu0 %v548
    %756 = vmatpush1.bf16.msra.mxu0 %v547
    %757 = vmatprep.subr.bf16.mxu0 %v546
    %758 = vmatpush1.bf16.msra.mxu0 %v545
    %759 = vmatprep.subr.bf16.mxu0 %v544
    %760 = vmatpush1.bf16.msra.mxu0 %v543
    %761 = vmatprep.subr.bf16.mxu0 %v542
    %762 = vmatpush1.bf16.msra.mxu0 %v541
    %763 = vmatprep.subr.bf16.mxu0 %v540
    %764 = vmatpush1.bf16.msra.mxu0 %v539
    %765 = vmatprep.subr.bf16.mxu0 %v538
    %766 = vmatpush1.bf16.msra.mxu0 %v537
    %767 = vmatprep.subr.bf16.mxu0 %v536
    %768 = vmatpush1.bf16.msra.mxu0 %v535
    %769 = vmatprep.subr.bf16.mxu0 %v566
    %770 = vmatpush2.bf16.msra.mxu0 %v565
    %771 = vmatprep.subr.bf16.mxu0 %v564
    %772 = vmatpush2.bf16.msra.mxu0 %v563
    %773 = vmatprep.subr.bf16.mxu0 %v562
    %774 = vmatpush2.bf16.msra.mxu0 %v561
    %775 = vmatprep.subr.bf16.mxu0 %v560
    %776 = vmatpush2.bf16.msra.mxu0 %v559
    %777 = vmatprep.subr.bf16.mxu0 %v558
    %778 = vmatpush2.bf16.msra.mxu0 %v557
    %779 = vmatprep.subr.bf16.mxu0 %v556
    %780 = vmatpush2.bf16.msra.mxu0 %v555
    %781 = vmatprep.subr.bf16.mxu0 %v554
    %782 = vmatpush2.bf16.msra.mxu0 %v553
    %783 = vmatprep.subr.bf16.mxu0 %v552
    %784 = vmatpush2.bf16.msra.mxu0 %v551
    %785 = vmatprep.mubr.bf16.mxu0 %v169
    %786 = vmatmul.mubr.bf16.gmra.mxu0 %v168
    %v787 = vpop.f32.mrf.mxu0
    %v788 = vadd.f32 %v747, %v787
    %v789 = vpop.f32.mrf.mxu0
    %v790 = vadd.f32 %v749, %v789
    %v791 = vpop.f32.mrf.mxu0
    %v792 = vpop.f32.mrf.mxu0
    %793 = vdwg.mxu0
    %794 = vmatprep.subr.bf16.mxu0 0
    %795 = vmatpush1.bf16.msra.mxu0 0
    %796 = vmatprep.subr.bf16.mxu0 0
    %797 = vmatpush1.bf16.msra.mxu0 0
    %798 = vmatprep.subr.bf16.mxu0 0
    %799 = vmatpush1.bf16.msra.mxu0 0
    %800 = vmatprep.subr.bf16.mxu0 0
    %801 = vmatpush1.bf16.msra.mxu0 0
    %802 = vmatprep.subr.bf16.mxu0 0
    %803 = vmatpush1.bf16.msra.mxu0 0
    %804 = vmatprep.subr.bf16.mxu0 0
    %805 = vmatpush1.bf16.msra.mxu0 0
    %806 = vmatprep.subr.bf16.mxu0 0
    %807 = vmatpush1.bf16.msra.mxu0 0
    %808 = vmatprep.subr.bf16.mxu0 %v568
    %809 = vmatpush1.bf16.msra.mxu0 %v567
    %810 = vmatprep.subr.bf16.mxu0 0
    %811 = vmatpush2.bf16.msra.mxu0 0
    %812 = vmatprep.subr.bf16.mxu0 0
    %813 = vmatpush2.bf16.msra.mxu0 0
    %814 = vmatprep.subr.bf16.mxu0 0
    %815 = vmatpush2.bf16.msra.mxu0 0
    %816 = vmatprep.subr.bf16.mxu0 0
    %817 = vmatpush2.bf16.msra.mxu0 0
    %818 = vmatprep.subr.bf16.mxu0 0
    %819 = vmatpush2.bf16.msra.mxu0 0
    %820 = vmatprep.subr.bf16.mxu0 0
    %821 = vmatpush2.bf16.msra.mxu0 0
    %822 = vmatprep.subr.bf16.mxu0 0
    %823 = vmatpush2.bf16.msra.mxu0 0
    %824 = vmatprep.subr.bf16.mxu0 0
    %825 = vmatpush2.bf16.msra.mxu0 0
    %826 = vmatprep.mubr.bf16.mxu0 0
    %827 = vmatmul.mubr.bf16.gmra.mxu0 %v669
    %v828 = vpop.f32.mrf.mxu0
    %v829 = vadd.f32 %v788, %v828
    %v830 = vpop.f32.mrf.mxu0
    %v831 = vadd.f32 %v790, %v830
    %v832 = vpop.f32.mrf.mxu0
    %v833 = vpop.f32.mrf.mxu0
    %834 = vdwg.mxu0
    %v835 = vmax.f32 %v829, 0.0
    %v836 = vmax.f32 %v831, 0.0
    %v837 = vld [vmem:[%s4] sm:$0xff]
    %v838 = vld [vmem:[%s4 + $0x8] sm:$0xff]
    %v839 = vld [vmem:[%s4 + $0x10] sm:$0xff]
    %v840 = vld [vmem:[%s4 + $0x18] sm:$0xff]
    %v841 = vld [vmem:[%s4 + $0x20] sm:$0xff]
    %v842 = vld [vmem:[%s4 + $0x28] sm:$0xff]
    %v843 = vld [vmem:[%s4 + $0x30] sm:$0xff]
    %v844 = vld [vmem:[%s4 + $0x38] sm:$0xff]
    %v845 = vld [vmem:[%s4 + $0x40] sm:$0xff]
    %v846 = vld [vmem:[%s4 + $0x48] sm:$0xff]
    %v847 = vld [vmem:[%s4 + $0x50] sm:$0xff]
    %v848 = vld [vmem:[%s4 + $0x58] sm:$0xff]
    %v849 = vld [vmem:[%s4 + $0x60] sm:$0xff]
    %v850 = vld [vmem:[%s4 + $0x68] sm:$0xff]
    %v851 = vld [vmem:[%s4 + $0x70] sm:$0xff]
    %v852 = vld [vmem:[%s4 + $0x78] sm:$0xff]
    %v853 = vld [vmem:[%s4 + $0x80] sm:$0xff]
    %v854 = vld [vmem:[%s4 + $0x88] sm:$0xff]
    %v855 = vld [vmem:[%s4 + $0x90] sm:$0xff]
    %v856 = vld [vmem:[%s4 + $0x98] sm:$0xff]
    %v857 = vld [vmem:[%s4 + $0xa0] sm:$0xff]
    %v858 = vld [vmem:[%s4 + $0xa8] sm:$0xff]
    %v859 = vld [vmem:[%s4 + $0xb0] sm:$0xff]
    %v860 = vld [vmem:[%s4 + $0xb8] sm:$0xff]
    %v861 = vld [vmem:[%s4 + $0xc0] sm:$0xff]
    %v862 = vld [vmem:[%s4 + $0xc8] sm:$0xff]
    %v863 = vld [vmem:[%s4 + $0xd0] sm:$0xff]
    %v864 = vld [vmem:[%s4 + $0xd8] sm:$0xff]
    %v865 = vld [vmem:[%s4 + $0xe0] sm:$0xff]
    %v866 = vld [vmem:[%s4 + $0xe8] sm:$0xff]
    %v867 = vld [vmem:[%s4 + $0xf0] sm:$0xff]
    %v868 = vld [vmem:[%s4 + $0xf8] sm:$0xff]
    %v869 = vld [vmem:[%s5] sm:$0x1]
    %v871 = vlaneseq
    %v872 = vshrl.u32 %v871, 7
    %v873 = vsub.s32 0, %v872
    %v874 = vrot.slane %v869, %v873
    %876 = vmatprep.subr.mxu0 0.0
    %877 = vmatpush1.msra.mxu0 %v852
    %878 = vmatprep.subr.mxu0 0.0
    %879 = vmatpush1.msra.mxu0 %v851
    %880 = vmatprep.subr.mxu0 0.0
    %881 = vmatpush1.msra.mxu0 %v850
    %882 = vmatprep.subr.mxu0 0.0
    %883 = vmatpush1.msra.mxu0 %v849
    %884 = vmatprep.subr.mxu0 0.0
    %885 = vmatpush1.msra.mxu0 %v848
    %886 = vmatprep.subr.mxu0 0.0
    %887 = vmatpush1.msra.mxu0 %v847
    %888 = vmatprep.subr.mxu0 0.0
    %889 = vmatpush1.msra.mxu0 %v846
    %890 = vmatprep.subr.mxu0 0.0
    %891 = vmatpush1.msra.mxu0 %v845
    %892 = vmatprep.subr.mxu0 0.0
    %893 = vmatpush1.msra.mxu0 %v844
    %894 = vmatprep.subr.mxu0 0.0
    %895 = vmatpush1.msra.mxu0 %v843
    %896 = vmatprep.subr.mxu0 0.0
    %897 = vmatpush1.msra.mxu0 %v842
    %898 = vmatprep.subr.mxu0 0.0
    %899 = vmatpush1.msra.mxu0 %v841
    %900 = vmatprep.subr.mxu0 0.0
    %901 = vmatpush1.msra.mxu0 %v840
    %902 = vmatprep.subr.mxu0 0.0
    %903 = vmatpush1.msra.mxu0 %v839
    %904 = vmatprep.subr.mxu0 0.0
    %905 = vmatpush1.msra.mxu0 %v838
    %906 = vmatprep.subr.mxu0 0.0
    %907 = vmatpush1.msra.mxu0 %v837
    %908 = vmatprep.subr.mxu0 0.0
    %909 = vmatpush2.msra.mxu0 %v868
    %910 = vmatprep.subr.mxu0 0.0
    %911 = vmatpush2.msra.mxu0 %v867
    %912 = vmatprep.subr.mxu0 0.0
    %913 = vmatpush2.msra.mxu0 %v866
    %914 = vmatprep.subr.mxu0 0.0
    %915 = vmatpush2.msra.mxu0 %v865
    %916 = vmatprep.subr.mxu0 0.0
    %917 = vmatpush2.msra.mxu0 %v864
    %918 = vmatprep.subr.mxu0 0.0
    %919 = vmatpush2.msra.mxu0 %v863
    %920 = vmatprep.subr.mxu0 0.0
    %921 = vmatpush2.msra.mxu0 %v862
    %922 = vmatprep.subr.mxu0 0.0
    %923 = vmatpush2.msra.mxu0 %v861
    %924 = vmatprep.subr.mxu0 0.0
    %925 = vmatpush2.msra.mxu0 %v860
    %926 = vmatprep.subr.mxu0 0.0
    %927 = vmatpush2.msra.mxu0 %v859
    %928 = vmatprep.subr.mxu0 0.0
    %929 = vmatpush2.msra.mxu0 %v858
    %930 = vmatprep.subr.mxu0 0.0
    %931 = vmatpush2.msra.mxu0 %v857
    %932 = vmatprep.subr.mxu0 0.0
    %933 = vmatpush2.msra.mxu0 %v856
    %934 = vmatprep.subr.mxu0 0.0
    %935 = vmatpush2.msra.mxu0 %v855
    %936 = vmatprep.subr.mxu0 0.0
    %937 = vmatpush2.msra.mxu0 %v854
    %938 = vmatprep.subr.mxu0 0.0
    %939 = vmatpush2.msra.mxu0 %v853
    %940 = vmatprep.mubr.f32.mxu0 %v836
    %941 = vmatmul.mubr.f32.gmra.mxu0 %v835
    %v942 = vpop.f32.mrf.mxu0
    %v943 = vadd.f32 %v874, %v942
    %v944 = vpop.f32.mrf.mxu0
    %945 = vdwg.mxu0
    %v946 = vld [vmem:[%s1] sm:$0xff]
    %v947 = vmul.f32 %v943, 1.442695
    %v948 = vpow.pop %v947
    %950 = vrot.lane.b32.xlu0 %v948, 126
    %v951 = vpop.permute.xlu0 %950
    %v953 = vmul.f32 %v946, %v951
    %v954 = vadd.f32 %v943, %v953
    %v955 = vld [vmem:[%s7] sm:$0x3]
    %v956 = vld [vmem:[%s6] ss:$2 sm:$0x3]
    %958 = vset.pattern.permute.xlu0 0
    %959 = vperm.xlu0 %958, %v954
    %v960 = vpop.permute.xlu0 %959
    %v963 = vlaneseq
    %v964 = vshrl.u32 %v963, 7
    %v965 = vsub.s32 0, %v964
    %v966 = vrot.slane %v956, %v965
    %v967 = vlaneseq
    %v968 = vshrl.u32 %v967, 7
    %v969 = vsub.s32 1, %v968
    %v970 = vrot.slane %v956, %v969
    %v973 = vmul.f32 %v960, %v966
    %v974 = vmul.f32 %v960, %v970
    %v976 = vlaneseq
    %v977 = vshrl.u32 %v976, 7
    %v978 = vsub.s32 0, %v977
    %v979 = vrot.slane %v955, %v978
    %v980 = vlaneseq
    %v981 = vshrl.u32 %v980, 7
    %v982 = vsub.s32 1, %v981
    %v983 = vrot.slane %v955, %v982
    %v986 = vadd.f32 %v979, %v973
    %v987 = vadd.f32 %v983, %v974
    %s988 = scalar_lea.vmem %s6, 1
    %v989 = vld [vmem:[%s988] ss:$2 sm:$0x3]
    %990 = vset.pattern.permute.xlu0 1
    %991 = vperm.xlu0 %990, %v954
    %v992 = vpop.permute.xlu0 %991
    %v995 = vlaneseq
    %v996 = vshrl.u32 %v995, 7
    %v997 = vsub.s32 0, %v996
    %v998 = vrot.slane %v989, %v997
    %v999 = vlaneseq
    %v1000 = vshrl.u32 %v999, 7
    %v1001 = vsub.s32 1, %v1000
    %v1002 = vrot.slane %v989, %v1001
    %v1005 = vmul.f32 %v992, %v998
    %v1006 = vmul.f32 %v992, %v1002
    %v1007 = vadd.f32 %v986, %v1005
    %v1008 = vadd.f32 %v987, %v1006
    %v1009 = vmax.f32 %v1007, 0.0
    %v1010 = vmax.f32 %v1008, 0.0
    %v1011 = vpack.c.bf16 %v1009, %v1009
    %v1012 = vpack.c.bf16 %v1010, %v1010
    %v1013 = vld [vmem:[%s8] sm:$0xff]
    %v1014 = vld [vmem:[%s8 + $0x8] sm:$0xff]
    %v1015 = vld [vmem:[%s8 + $0x10] sm:$0xff]
    %v1016 = vld [vmem:[%s8 + $0x18] sm:$0xf]
    %v1017 = vld [vmem:[%s8 + $0x1c] sm:$0xff]
    %v1018 = vld [vmem:[%s8 + $0x24] sm:$0xff]
    %v1019 = vld [vmem:[%s8 + $0x2c] sm:$0xff]
    %v1020 = vld [vmem:[%s8 + $0x34] sm:$0xf]
    %v1021 = vld [vmem:[%s8 + $0x38] sm:$0xff]
    %v1022 = vld [vmem:[%s8 + $0x40] sm:$0xff]
    %v1023 = vld [vmem:[%s8 + $0x48] sm:$0xff]
    %v1024 = vld [vmem:[%s8 + $0x50] sm:$0xf]
    %v1025 = vld [vmem:[%s8 + $0x54] sm:$0xff]
    %v1026 = vld [vmem:[%s8 + $0x5c] sm:$0xff]
    %v1027 = vld [vmem:[%s8 + $0x64] sm:$0xff]
    %v1028 = vld [vmem:[%s8 + $0x6c] sm:$0xf]
    %v1029 = vld [vmem:[%s8 + $0x70] sm:$0xff]
    %v1030 = vld [vmem:[%s8 + $0x78] sm:$0xff]
    %v1031 = vld [vmem:[%s8 + $0x80] sm:$0xff]
    %v1032 = vld [vmem:[%s8 + $0x88] sm:$0xf]
    %v1033 = vld [vmem:[%s8 + $0x8c] sm:$0xff]
    %v1034 = vld [vmem:[%s8 + $0x94] sm:$0xff]
    %v1035 = vld [vmem:[%s8 + $0x9c] sm:$0xff]
    %v1036 = vld [vmem:[%s8 + $0xa4] sm:$0xf]
    %v1037 = vld [vmem:[%s8 + $0xa8] sm:$0xff]
    %v1038 = vld [vmem:[%s8 + $0xb0] sm:$0xff]
    %v1039 = vld [vmem:[%s8 + $0xb8] sm:$0xff]
    %v1040 = vld [vmem:[%s8 + $0xc0] sm:$0xf]
    %v1041 = vld [vmem:[%s8 + $0xc4] sm:$0xff]
    %v1042 = vld [vmem:[%s8 + $0xcc] sm:$0xff]
    %v1043 = vld [vmem:[%s8 + $0xd4] sm:$0xff]
    %v1044 = vld [vmem:[%s8 + $0xdc] sm:$0xf]
    %v1045 = vld [vmem:[%s8 + $0xe0] sm:$0xff]
    %v1046 = vld [vmem:[%s8 + $0xe8] sm:$0xff]
    %v1047 = vld [vmem:[%s8 + $0xf0] sm:$0xff]
    %v1048 = vld [vmem:[%s8 + $0xf8] sm:$0xf]
    %v1049 = vld [vmem:[%s8 + $0xfc] sm:$0xff]
    %v1050 = vld [vmem:[%s8 + $0x104] sm:$0xff]
    %v1051 = vld [vmem:[%s8 + $0x10c] sm:$0xff]
    %v1052 = vld [vmem:[%s8 + $0x114] sm:$0xf]
    %v1053 = vld [vmem:[%s8 + $0x118] sm:$0xff]
    %v1054 = vld [vmem:[%s8 + $0x120] sm:$0xff]
    %v1055 = vld [vmem:[%s8 + $0x128] sm:$0xff]
    %v1056 = vld [vmem:[%s8 + $0x130] sm:$0xf]
    %v1057 = vld [vmem:[%s8 + $0x134] sm:$0xff]
    %v1058 = vld [vmem:[%s8 + $0x13c] sm:$0xff]
    %v1059 = vld [vmem:[%s8 + $0x144] sm:$0xff]
    %v1060 = vld [vmem:[%s8 + $0x14c] sm:$0xf]
    %v1061 = vld [vmem:[%s8 + $0x150] sm:$0xff]
    %v1062 = vld [vmem:[%s8 + $0x158] sm:$0xff]
    %v1063 = vld [vmem:[%s8 + $0x160] sm:$0xff]
    %v1064 = vld [vmem:[%s8 + $0x168] sm:$0xf]
    %v1065 = vld [vmem:[%s8 + $0x16c] sm:$0xff]
    %v1066 = vld [vmem:[%s8 + $0x174] sm:$0xff]
    %v1067 = vld [vmem:[%s8 + $0x17c] sm:$0xff]
    %v1068 = vld [vmem:[%s8 + $0x184] sm:$0xf]
    %v1069 = vld [vmem:[%s8 + $0x188] sm:$0xff]
    %v1070 = vld [vmem:[%s8 + $0x190] sm:$0xff]
    %v1071 = vld [vmem:[%s8 + $0x198] sm:$0xff]
    %v1072 = vld [vmem:[%s8 + $0x1a0] sm:$0xf]
    %v1073 = vld [vmem:[%s8 + $0x1a4] sm:$0xff]
    %v1074 = vld [vmem:[%s8 + $0x1ac] sm:$0xff]
    %v1075 = vld [vmem:[%s8 + $0x1b4] sm:$0xff]
    %v1076 = vld [vmem:[%s8 + $0x1bc] sm:$0xf]
    %v1077 = vld [vmem:[%s8 + $0x1c0] sm:$0xff]
    %v1078 = vld [vmem:[%s8 + $0x1c8] sm:$0xff]
    %v1079 = vld [vmem:[%s8 + $0x1d0] sm:$0xff]
    %v1080 = vld [vmem:[%s8 + $0x1d8] sm:$0xf]
    %v1081 = vld [vmem:[%s8 + $0x1dc] sm:$0xff]
    %v1082 = vld [vmem:[%s8 + $0x1e4] sm:$0xff]
    %v1083 = vld [vmem:[%s8 + $0x1ec] sm:$0xff]
    %v1084 = vld [vmem:[%s8 + $0x1f4] sm:$0xf]
    %v1085 = vld [vmem:[%s8 + $0x1f8] sm:$0xff]
    %v1086 = vld [vmem:[%s8 + $0x200] sm:$0xff]
    %v1087 = vld [vmem:[%s8 + $0x208] sm:$0xff]
    %v1088 = vld [vmem:[%s8 + $0x210] sm:$0xf]
    %v1089 = vld [vmem:[%s8 + $0x214] sm:$0xff]
    %v1090 = vld [vmem:[%s8 + $0x21c] sm:$0xff]
    %v1091 = vld [vmem:[%s8 + $0x224] sm:$0xff]
    %v1092 = vld [vmem:[%s8 + $0x22c] sm:$0xf]
    %v1093 = vld [vmem:[%s8 + $0x230] sm:$0xff]
    %v1094 = vld [vmem:[%s8 + $0x238] sm:$0xff]
    %v1095 = vld [vmem:[%s8 + $0x240] sm:$0xff]
    %v1096 = vld [vmem:[%s8 + $0x248] sm:$0xf]
    %v1097 = vld [vmem:[%s8 + $0x24c] sm:$0xff]
    %v1098 = vld [vmem:[%s8 + $0x254] sm:$0xff]
    %v1099 = vld [vmem:[%s8 + $0x25c] sm:$0xff]
    %v1100 = vld [vmem:[%s8 + $0x264] sm:$0xf]
    %v1101 = vld [vmem:[%s8 + $0x268] sm:$0xff]
    %v1102 = vld [vmem:[%s8 + $0x270] sm:$0xff]
    %v1103 = vld [vmem:[%s8 + $0x278] sm:$0xff]
    %v1104 = vld [vmem:[%s8 + $0x280] sm:$0xf]
    %v1105 = vld [vmem:[%s8 + $0x284] sm:$0xff]
    %v1106 = vld [vmem:[%s8 + $0x28c] sm:$0xff]
    %v1107 = vld [vmem:[%s8 + $0x294] sm:$0xff]
    %v1108 = vld [vmem:[%s8 + $0x29c] sm:$0xf]
    %v1109 = vld [vmem:[%s8 + $0x2a0] sm:$0xff]
    %v1110 = vld [vmem:[%s8 + $0x2a8] sm:$0xff]
    %v1111 = vld [vmem:[%s8 + $0x2b0] sm:$0xff]
    %v1112 = vld [vmem:[%s8 + $0x2b8] sm:$0xf]
    %v1113 = vld [vmem:[%s8 + $0x2bc] sm:$0xff]
    %v1114 = vld [vmem:[%s8 + $0x2c4] sm:$0xff]
    %v1115 = vld [vmem:[%s8 + $0x2cc] sm:$0xff]
    %v1116 = vld [vmem:[%s8 + $0x2d4] sm:$0xf]
    %v1117 = vld [vmem:[%s8 + $0x2d8] sm:$0xff]
    %v1118 = vld [vmem:[%s8 + $0x2e0] sm:$0xff]
    %v1119 = vld [vmem:[%s8 + $0x2e8] sm:$0xff]
    %v1120 = vld [vmem:[%s8 + $0x2f0] sm:$0xf]
    %v1121 = vld [vmem:[%s8 + $0x2f4] sm:$0xff]
    %v1122 = vld [vmem:[%s8 + $0x2fc] sm:$0xff]
    %v1123 = vld [vmem:[%s8 + $0x304] sm:$0xff]
    %v1124 = vld [vmem:[%s8 + $0x30c] sm:$0xf]
    %v1125 = vld [vmem:[%s8 + $0x310] sm:$0xff]
    %v1126 = vld [vmem:[%s8 + $0x318] sm:$0xff]
    %v1127 = vld [vmem:[%s8 + $0x320] sm:$0xff]
    %v1128 = vld [vmem:[%s8 + $0x328] sm:$0xf]
    %v1129 = vld [vmem:[%s8 + $0x32c] sm:$0xff]
    %v1130 = vld [vmem:[%s8 + $0x334] sm:$0xff]
    %v1131 = vld [vmem:[%s8 + $0x33c] sm:$0xff]
    %v1132 = vld [vmem:[%s8 + $0x344] sm:$0xf]
    %v1133 = vld [vmem:[%s8 + $0x348] sm:$0xff]
    %v1134 = vld [vmem:[%s8 + $0x350] sm:$0xff]
    %v1135 = vld [vmem:[%s8 + $0x358] sm:$0xff]
    %v1136 = vld [vmem:[%s8 + $0x360] sm:$0xf]
    %v1137 = vld [vmem:[%s8 + $0x364] sm:$0xff]
    %v1138 = vld [vmem:[%s8 + $0x36c] sm:$0xff]
    %v1139 = vld [vmem:[%s8 + $0x374] sm:$0xff]
    %v1140 = vld [vmem:[%s8 + $0x37c] sm:$0xf]
    %v1141 = vld [vmem:[%s9] sm:$0x7f]
    %v1143 = vlaneseq
    %v1144 = vshrl.u32 %v1143, 7
    %v1145 = vsub.s32 0, %v1144
    %v1146 = vrot.slane %v1141, %v1145
    %v1147 = vlaneseq
    %v1148 = vshrl.u32 %v1147, 7
    %v1149 = vsub.s32 1, %v1148
    %v1150 = vrot.slane %v1141, %v1149
    %v1151 = vlaneseq
    %v1152 = vshrl.u32 %v1151, 7
    %v1153 = vsub.s32 2, %v1152
    %v1154 = vrot.slane %v1141, %v1153
    %v1155 = vlaneseq
    %v1156 = vshrl.u32 %v1155, 7
    %v1157 = vsub.s32 3, %v1156
    %v1158 = vrot.slane %v1141, %v1157
    %v1159 = vlaneseq
    %v1160 = vshrl.u32 %v1159, 7
    %v1161 = vsub.s32 4, %v1160
    %v1162 = vrot.slane %v1141, %v1161
    %v1163 = vlaneseq
    %v1164 = vshrl.u32 %v1163, 7
    %v1165 = vsub.s32 5, %v1164
    %v1166 = vrot.slane %v1141, %v1165
    %v1167 = vlaneseq
    %v1168 = vshrl.u32 %v1167, 7
    %v1169 = vsub.s32 6, %v1168
    %v1170 = vrot.slane %v1141, %v1169
    %v1306 = vunpack.c.l.b16 %v1013
    %v1307 = vunpack.c.h.b16 %v1013
    %v1308 = vunpack.c.l.b16 %v1014
    %v1309 = vunpack.c.h.b16 %v1014
    %v1310 = vunpack.c.l.b16 %v1015
    %v1311 = vunpack.c.h.b16 %v1015
    %v1312 = vunpack.c.l.b16 %v1016
    %v1313 = vunpack.c.l.b16 %v1017
    %v1314 = vunpack.c.h.b16 %v1017
    %v1315 = vunpack.c.l.b16 %v1018
    %v1316 = vunpack.c.h.b16 %v1018
    %v1317 = vunpack.c.l.b16 %v1019
    %v1318 = vunpack.c.h.b16 %v1019
    %v1319 = vunpack.c.l.b16 %v1020
    %v1320 = vunpack.c.l.b16 %v1021
    %v1321 = vunpack.c.h.b16 %v1021
    %v1322 = vunpack.c.l.b16 %v1022
    %v1323 = vunpack.c.h.b16 %v1022
    %v1324 = vunpack.c.l.b16 %v1023
    %v1325 = vunpack.c.h.b16 %v1023
    %v1326 = vunpack.c.l.b16 %v1024
    %v1327 = vunpack.c.l.b16 %v1025
    %v1328 = vunpack.c.h.b16 %v1025
    %v1329 = vunpack.c.l.b16 %v1026
    %v1330 = vunpack.c.h.b16 %v1026
    %v1331 = vunpack.c.l.b16 %v1027
    %v1332 = vunpack.c.h.b16 %v1027
    %v1333 = vunpack.c.l.b16 %v1028
    %v1334 = vunpack.c.l.b16 %v1029
    %v1335 = vunpack.c.h.b16 %v1029
    %v1336 = vunpack.c.l.b16 %v1030
    %v1337 = vunpack.c.h.b16 %v1030
    %v1338 = vunpack.c.l.b16 %v1031
    %v1339 = vunpack.c.h.b16 %v1031
    %v1340 = vunpack.c.l.b16 %v1032
    %v1341 = vunpack.c.l.b16 %v1033
    %v1342 = vunpack.c.h.b16 %v1033
    %v1343 = vunpack.c.l.b16 %v1034
    %v1344 = vunpack.c.h.b16 %v1034
    %v1345 = vunpack.c.l.b16 %v1035
    %v1346 = vunpack.c.h.b16 %v1035
    %v1347 = vunpack.c.l.b16 %v1036
    %v1348 = vunpack.c.l.b16 %v1037
    %v1349 = vunpack.c.h.b16 %v1037
    %v1350 = vunpack.c.l.b16 %v1038
    %v1351 = vunpack.c.h.b16 %v1038
    %v1352 = vunpack.c.l.b16 %v1039
    %v1353 = vunpack.c.h.b16 %v1039
    %v1354 = vunpack.c.l.b16 %v1040
    %v1355 = vunpack.c.l.b16 %v1041
    %v1356 = vunpack.c.h.b16 %v1041
    %v1357 = vunpack.c.l.b16 %v1042
    %v1358 = vunpack.c.h.b16 %v1042
    %v1359 = vunpack.c.l.b16 %v1043
    %v1360 = vunpack.c.h.b16 %v1043
    %v1361 = vunpack.c.l.b16 %v1044
    %v1362 = vunpack.c.l.b16 %v1045
    %v1363 = vunpack.c.h.b16 %v1045
    %v1364 = vunpack.c.l.b16 %v1046
    %v1365 = vunpack.c.h.b16 %v1046
    %v1366 = vunpack.c.l.b16 %v1047
    %v1367 = vunpack.c.h.b16 %v1047
    %v1368 = vunpack.c.l.b16 %v1048
    %v1369 = vunpack.c.l.b16 %v1049
    %v1370 = vunpack.c.h.b16 %v1049
    %v1371 = vunpack.c.l.b16 %v1050
    %v1372 = vunpack.c.h.b16 %v1050
    %v1373 = vunpack.c.l.b16 %v1051
    %v1374 = vunpack.c.h.b16 %v1051
    %v1375 = vunpack.c.l.b16 %v1052
    %v1376 = vunpack.c.l.b16 %v1053
    %v1377 = vunpack.c.h.b16 %v1053
    %v1378 = vunpack.c.l.b16 %v1054
    %v1379 = vunpack.c.h.b16 %v1054
    %v1380 = vunpack.c.l.b16 %v1055
    %v1381 = vunpack.c.h.b16 %v1055
    %v1382 = vunpack.c.l.b16 %v1056
    %v1383 = vunpack.c.l.b16 %v1057
    %v1384 = vunpack.c.h.b16 %v1057
    %v1385 = vunpack.c.l.b16 %v1058
    %v1386 = vunpack.c.h.b16 %v1058
    %v1387 = vunpack.c.l.b16 %v1059
    %v1388 = vunpack.c.h.b16 %v1059
    %v1389 = vunpack.c.l.b16 %v1060
    %v1390 = vunpack.c.l.b16 %v1061
    %v1391 = vunpack.c.h.b16 %v1061
    %v1392 = vunpack.c.l.b16 %v1062
    %v1393 = vunpack.c.h.b16 %v1062
    %v1394 = vunpack.c.l.b16 %v1063
    %v1395 = vunpack.c.h.b16 %v1063
    %v1396 = vunpack.c.l.b16 %v1064
    %v1397 = vunpack.c.l.b16 %v1065
    %v1398 = vunpack.c.h.b16 %v1065
    %v1399 = vunpack.c.l.b16 %v1066
    %v1400 = vunpack.c.h.b16 %v1066
    %v1401 = vunpack.c.l.b16 %v1067
    %v1402 = vunpack.c.h.b16 %v1067
    %v1403 = vunpack.c.l.b16 %v1068
    %v1404 = vunpack.c.l.b16 %v1069
    %v1405 = vunpack.c.h.b16 %v1069
    %v1406 = vunpack.c.l.b16 %v1070
    %v1407 = vunpack.c.h.b16 %v1070
    %v1408 = vunpack.c.l.b16 %v1071
    %v1409 = vunpack.c.h.b16 %v1071
    %v1410 = vunpack.c.l.b16 %v1072
    %v1411 = vunpack.c.l.b16 %v1073
    %v1412 = vunpack.c.h.b16 %v1073
    %v1413 = vunpack.c.l.b16 %v1074
    %v1414 = vunpack.c.h.b16 %v1074
    %v1415 = vunpack.c.l.b16 %v1075
    %v1416 = vunpack.c.h.b16 %v1075
    %v1417 = vunpack.c.l.b16 %v1076
    %v1418 = vunpack.c.l.b16 %v1077
    %v1419 = vunpack.c.h.b16 %v1077
    %v1420 = vunpack.c.l.b16 %v1078
    %v1421 = vunpack.c.h.b16 %v1078
    %v1422 = vunpack.c.l.b16 %v1079
    %v1423 = vunpack.c.h.b16 %v1079
    %v1424 = vunpack.c.l.b16 %v1080
    %v1425 = vunpack.c.l.b16 %v1081
    %v1426 = vunpack.c.h.b16 %v1081
    %v1427 = vunpack.c.l.b16 %v1082
    %v1428 = vunpack.c.h.b16 %v1082
    %v1429 = vunpack.c.l.b16 %v1083
    %v1430 = vunpack.c.h.b16 %v1083
    %v1431 = vunpack.c.l.b16 %v1084
    %v1432 = vunpack.c.l.b16 %v1085
    %v1433 = vunpack.c.h.b16 %v1085
    %v1434 = vunpack.c.l.b16 %v1086
    %v1435 = vunpack.c.h.b16 %v1086
    %v1436 = vunpack.c.l.b16 %v1087
    %v1437 = vunpack.c.h.b16 %v1087
    %v1438 = vunpack.c.l.b16 %v1088
    %v1439 = vunpack.c.l.b16 %v1089
    %v1440 = vunpack.c.h.b16 %v1089
    %v1441 = vunpack.c.l.b16 %v1090
    %v1442 = vunpack.c.h.b16 %v1090
    %v1443 = vunpack.c.l.b16 %v1091
    %v1444 = vunpack.c.h.b16 %v1091
    %v1445 = vunpack.c.l.b16 %v1092
    %v1446 = vunpack.c.l.b16 %v1093
    %v1447 = vunpack.c.h.b16 %v1093
    %v1448 = vunpack.c.l.b16 %v1094
    %v1449 = vunpack.c.h.b16 %v1094
    %v1450 = vunpack.c.l.b16 %v1095
    %v1451 = vunpack.c.h.b16 %v1095
    %v1452 = vunpack.c.l.b16 %v1096
    %v1453 = vunpack.c.l.b16 %v1097
    %v1454 = vunpack.c.h.b16 %v1097
    %v1455 = vunpack.c.l.b16 %v1098
    %v1456 = vunpack.c.h.b16 %v1098
    %v1457 = vunpack.c.l.b16 %v1099
    %v1458 = vunpack.c.h.b16 %v1099
    %v1459 = vunpack.c.l.b16 %v1100
    %v1460 = vunpack.c.l.b16 %v1101
    %v1461 = vunpack.c.h.b16 %v1101
    %v1462 = vunpack.c.l.b16 %v1102
    %v1463 = vunpack.c.h.b16 %v1102
    %v1464 = vunpack.c.l.b16 %v1103
    %v1465 = vunpack.c.h.b16 %v1103
    %v1466 = vunpack.c.l.b16 %v1104
    %v1467 = vunpack.c.l.b16 %v1105
    %v1468 = vunpack.c.h.b16 %v1105
    %v1469 = vunpack.c.l.b16 %v1106
    %v1470 = vunpack.c.h.b16 %v1106
    %v1471 = vunpack.c.l.b16 %v1107
    %v1472 = vunpack.c.h.b16 %v1107
    %v1473 = vunpack.c.l.b16 %v1108
    %v1474 = vunpack.c.l.b16 %v1109
    %v1475 = vunpack.c.h.b16 %v1109
    %v1476 = vunpack.c.l.b16 %v1110
    %v1477 = vunpack.c.h.b16 %v1110
    %v1478 = vunpack.c.l.b16 %v1111
    %v1479 = vunpack.c.h.b16 %v1111
    %v1480 = vunpack.c.l.b16 %v1112
    %v1481 = vunpack.c.l.b16 %v1113
    %v1482 = vunpack.c.h.b16 %v1113
    %v1483 = vunpack.c.l.b16 %v1114
    %v1484 = vunpack.c.h.b16 %v1114
    %v1485 = vunpack.c.l.b16 %v1115
    %v1486 = vunpack.c.h.b16 %v1115
    %v1487 = vunpack.c.l.b16 %v1116
    %v1488 = vunpack.c.l.b16 %v1117
    %v1489 = vunpack.c.h.b16 %v1117
    %v1490 = vunpack.c.l.b16 %v1118
    %v1491 = vunpack.c.h.b16 %v1118
    %v1492 = vunpack.c.l.b16 %v1119
    %v1493 = vunpack.c.h.b16 %v1119
    %v1494 = vunpack.c.l.b16 %v1120
    %v1495 = vunpack.c.l.b16 %v1121
    %v1496 = vunpack.c.h.b16 %v1121
    %v1497 = vunpack.c.l.b16 %v1122
    %v1498 = vunpack.c.h.b16 %v1122
    %v1499 = vunpack.c.l.b16 %v1123
    %v1500 = vunpack.c.h.b16 %v1123
    %v1501 = vunpack.c.l.b16 %v1124
    %v1502 = vunpack.c.l.b16 %v1125
    %v1503 = vunpack.c.h.b16 %v1125
    %v1504 = vunpack.c.l.b16 %v1126
    %v1505 = vunpack.c.h.b16 %v1126
    %v1506 = vunpack.c.l.b16 %v1127
    %v1507 = vunpack.c.h.b16 %v1127
    %v1508 = vunpack.c.l.b16 %v1128
    %v1509 = vunpack.c.l.b16 %v1129
    %v1510 = vunpack.c.h.b16 %v1129
    %v1511 = vunpack.c.l.b16 %v1130
    %v1512 = vunpack.c.h.b16 %v1130
    %v1513 = vunpack.c.l.b16 %v1131
    %v1514 = vunpack.c.h.b16 %v1131
    %v1515 = vunpack.c.l.b16 %v1132
    %v1516 = vunpack.c.l.b16 %v1133
    %v1517 = vunpack.c.h.b16 %v1133
    %v1518 = vunpack.c.l.b16 %v1134
    %v1519 = vunpack.c.h.b16 %v1134
    %v1520 = vunpack.c.l.b16 %v1135
    %v1521 = vunpack.c.h.b16 %v1135
    %v1522 = vunpack.c.l.b16 %v1136
    %v1523 = vunpack.c.l.b16 %v1137
    %v1524 = vunpack.c.h.b16 %v1137
    %v1525 = vunpack.c.l.b16 %v1138
    %v1526 = vunpack.c.h.b16 %v1138
    %v1527 = vunpack.c.l.b16 %v1139
    %v1528 = vunpack.c.h.b16 %v1139
    %v1529 = vunpack.c.l.b16 %v1140
    %v1530 = vpack.c.b16 %v1313, %v1306
    %v1531 = vpack.c.b16 %v1314, %v1307
    %v1532 = vpack.c.b16 %v1315, %v1308
    %v1533 = vpack.c.b16 %v1316, %v1309
    %v1534 = vpack.c.b16 %v1317, %v1310
    %v1535 = vpack.c.b16 %v1318, %v1311
    %v1536 = vpack.c.b16 %v1319, %v1312
    %v1537 = vpack.c.b16 %v1327, %v1320
    %v1538 = vpack.c.b16 %v1328, %v1321
    %v1539 = vpack.c.b16 %v1329, %v1322
    %v1540 = vpack.c.b16 %v1330, %v1323
    %v1541 = vpack.c.b16 %v1331, %v1324
    %v1542 = vpack.c.b16 %v1332, %v1325
    %v1543 = vpack.c.b16 %v1333, %v1326
    %v1544 = vpack.c.b16 %v1341, %v1334
    %v1545 = vpack.c.b16 %v1342, %v1335
    %v1546 = vpack.c.b16 %v1343, %v1336
    %v1547 = vpack.c.b16 %v1344, %v1337
    %v1548 = vpack.c.b16 %v1345, %v1338
    %v1549 = vpack.c.b16 %v1346, %v1339
    %v1550 = vpack.c.b16 %v1347, %v1340
    %v1551 = vpack.c.b16 %v1355, %v1348
    %v1552 = vpack.c.b16 %v1356, %v1349
    %v1553 = vpack.c.b16 %v1357, %v1350
    %v1554 = vpack.c.b16 %v1358, %v1351
    %v1555 = vpack.c.b16 %v1359, %v1352
    %v1556 = vpack.c.b16 %v1360, %v1353
    %v1557 = vpack.c.b16 %v1361, %v1354
    %v1558 = vpack.c.b16 %v1369, %v1362
    %v1559 = vpack.c.b16 %v1370, %v1363
    %v1560 = vpack.c.b16 %v1371, %v1364
    %v1561 = vpack.c.b16 %v1372, %v1365
    %v1562 = vpack.c.b16 %v1373, %v1366
    %v1563 = vpack.c.b16 %v1374, %v1367
    %v1564 = vpack.c.b16 %v1375, %v1368
    %v1565 = vpack.c.b16 %v1383, %v1376
    %v1566 = vpack.c.b16 %v1384, %v1377
    %v1567 = vpack.c.b16 %v1385, %v1378
    %v1568 = vpack.c.b16 %v1386, %v1379
    %v1569 = vpack.c.b16 %v1387, %v1380
    %v1570 = vpack.c.b16 %v1388, %v1381
    %v1571 = vpack.c.b16 %v1389, %v1382
    %v1572 = vpack.c.b16 %v1397, %v1390
    %v1573 = vpack.c.b16 %v1398, %v1391
    %v1574 = vpack.c.b16 %v1399, %v1392
    %v1575 = vpack.c.b16 %v1400, %v1393
    %v1576 = vpack.c.b16 %v1401, %v1394
    %v1577 = vpack.c.b16 %v1402, %v1395
    %v1578 = vpack.c.b16 %v1403, %v1396
    %v1579 = vpack.c.b16 %v1411, %v1404
    %v1580 = vpack.c.b16 %v1412, %v1405
    %v1581 = vpack.c.b16 %v1413, %v1406
    %v1582 = vpack.c.b16 %v1414, %v1407
    %v1583 = vpack.c.b16 %v1415, %v1408
    %v1584 = vpack.c.b16 %v1416, %v1409
    %v1585 = vpack.c.b16 %v1417, %v1410
    %v1586 = vpack.c.b16 %v1425, %v1418
    %v1587 = vpack.c.b16 %v1426, %v1419
    %v1588 = vpack.c.b16 %v1427, %v1420
    %v1589 = vpack.c.b16 %v1428, %v1421
    %v1590 = vpack.c.b16 %v1429, %v1422
    %v1591 = vpack.c.b16 %v1430, %v1423
    %v1592 = vpack.c.b16 %v1431, %v1424
    %v1593 = vpack.c.b16 %v1439, %v1432
    %v1594 = vpack.c.b16 %v1440, %v1433
    %v1595 = vpack.c.b16 %v1441, %v1434
    %v1596 = vpack.c.b16 %v1442, %v1435
    %v1597 = vpack.c.b16 %v1443, %v1436
    %v1598 = vpack.c.b16 %v1444, %v1437
    %v1599 = vpack.c.b16 %v1445, %v1438
    %v1600 = vpack.c.b16 %v1453, %v1446
    %v1601 = vpack.c.b16 %v1454, %v1447
    %v1602 = vpack.c.b16 %v1455, %v1448
    %v1603 = vpack.c.b16 %v1456, %v1449
    %v1604 = vpack.c.b16 %v1457, %v1450
    %v1605 = vpack.c.b16 %v1458, %v1451
    %v1606 = vpack.c.b16 %v1459, %v1452
    %v1607 = vpack.c.b16 %v1467, %v1460
    %v1608 = vpack.c.b16 %v1468, %v1461
    %v1609 = vpack.c.b16 %v1469, %v1462
    %v1610 = vpack.c.b16 %v1470, %v1463
    %v1611 = vpack.c.b16 %v1471, %v1464
    %v1612 = vpack.c.b16 %v1472, %v1465
    %v1613 = vpack.c.b16 %v1473, %v1466
    %v1614 = vpack.c.b16 %v1481, %v1474
    %v1615 = vpack.c.b16 %v1482, %v1475
    %v1616 = vpack.c.b16 %v1483, %v1476
    %v1617 = vpack.c.b16 %v1484, %v1477
    %v1618 = vpack.c.b16 %v1485, %v1478
    %v1619 = vpack.c.b16 %v1486, %v1479
    %v1620 = vpack.c.b16 %v1487, %v1480
    %v1621 = vpack.c.b16 %v1495, %v1488
    %v1622 = vpack.c.b16 %v1496, %v1489
    %v1623 = vpack.c.b16 %v1497, %v1490
    %v1624 = vpack.c.b16 %v1498, %v1491
    %v1625 = vpack.c.b16 %v1499, %v1492
    %v1626 = vpack.c.b16 %v1500, %v1493
    %v1627 = vpack.c.b16 %v1501, %v1494
    %v1628 = vpack.c.b16 %v1509, %v1502
    %v1629 = vpack.c.b16 %v1510, %v1503
    %v1630 = vpack.c.b16 %v1511, %v1504
    %v1631 = vpack.c.b16 %v1512, %v1505
    %v1632 = vpack.c.b16 %v1513, %v1506
    %v1633 = vpack.c.b16 %v1514, %v1507
    %v1634 = vpack.c.b16 %v1515, %v1508
    %v1635 = vpack.c.b16 %v1523, %v1516
    %v1636 = vpack.c.b16 %v1524, %v1517
    %v1637 = vpack.c.b16 %v1525, %v1518
    %v1638 = vpack.c.b16 %v1526, %v1519
    %v1639 = vpack.c.b16 %v1527, %v1520
    %v1640 = vpack.c.b16 %v1528, %v1521
    %v1641 = vpack.c.b16 %v1529, %v1522
    %1754 = vmatprep.subr.bf16.mxu0 %v1580
    %1755 = vmatpush1.bf16.msra.mxu0 %v1579
    %1756 = vmatprep.subr.bf16.mxu0 %v1573
    %1757 = vmatpush1.bf16.msra.mxu0 %v1572
    %1758 = vmatprep.subr.bf16.mxu0 %v1566
    %1759 = vmatpush1.bf16.msra.mxu0 %v1565
    %1760 = vmatprep.subr.bf16.mxu0 %v1559
    %1761 = vmatpush1.bf16.msra.mxu0 %v1558
    %1762 = vmatprep.subr.bf16.mxu0 %v1552
    %1763 = vmatpush1.bf16.msra.mxu0 %v1551
    %1764 = vmatprep.subr.bf16.mxu0 %v1545
    %1765 = vmatpush1.bf16.msra.mxu0 %v1544
    %1766 = vmatprep.subr.bf16.mxu0 %v1538
    %1767 = vmatpush1.bf16.msra.mxu0 %v1537
    %1768 = vmatprep.subr.bf16.mxu0 %v1531
    %1769 = vmatpush1.bf16.msra.mxu0 %v1530
    %1770 = vmatprep.subr.bf16.mxu0 %v1636
    %1771 = vmatpush2.bf16.msra.mxu0 %v1635
    %1772 = vmatprep.subr.bf16.mxu0 %v1629
    %1773 = vmatpush2.bf16.msra.mxu0 %v1628
    %1774 = vmatprep.subr.bf16.mxu0 %v1622
    %1775 = vmatpush2.bf16.msra.mxu0 %v1621
    %1776 = vmatprep.subr.bf16.mxu0 %v1615
    %1777 = vmatpush2.bf16.msra.mxu0 %v1614
    %1778 = vmatprep.subr.bf16.mxu0 %v1608
    %1779 = vmatpush2.bf16.msra.mxu0 %v1607
    %1780 = vmatprep.subr.bf16.mxu0 %v1601
    %1781 = vmatpush2.bf16.msra.mxu0 %v1600
    %1782 = vmatprep.subr.bf16.mxu0 %v1594
    %1783 = vmatpush2.bf16.msra.mxu0 %v1593
    %1784 = vmatprep.subr.bf16.mxu0 %v1587
    %1785 = vmatpush2.bf16.msra.mxu0 %v1586
    %1786 = vmatprep.mubr.bf16.mxu0 %v1012
    %1787 = vmatmul.mubr.bf16.gmra.mxu0 %v1011
    %v1788 = vpop.f32.mrf.mxu0
    %v1789 = vadd.f32 %v1146, %v1788
    %v1790 = vpop.f32.mrf.mxu0
    %v1791 = vadd.f32 %v1150, %v1790
    %v1792 = vpop.f32.mrf.mxu0
    %v1793 = vpop.f32.mrf.mxu0
    %1794 = vdwg.mxu0
    %1795 = vmatprep.subr.bf16.mxu0 %v1582
    %1796 = vmatpush1.bf16.msra.mxu0 %v1581
    %1797 = vmatprep.subr.bf16.mxu0 %v1575
    %1798 = vmatpush1.bf16.msra.mxu0 %v1574
    %1799 = vmatprep.subr.bf16.mxu0 %v1568
    %1800 = vmatpush1.bf16.msra.mxu0 %v1567
    %1801 = vmatprep.subr.bf16.mxu0 %v1561
    %1802 = vmatpush1.bf16.msra.mxu0 %v1560
    %1803 = vmatprep.subr.bf16.mxu0 %v1554
    %1804 = vmatpush1.bf16.msra.mxu0 %v1553
    %1805 = vmatprep.subr.bf16.mxu0 %v1547
    %1806 = vmatpush1.bf16.msra.mxu0 %v1546
    %1807 = vmatprep.subr.bf16.mxu0 %v1540
    %1808 = vmatpush1.bf16.msra.mxu0 %v1539
    %1809 = vmatprep.subr.bf16.mxu0 %v1533
    %1810 = vmatpush1.bf16.msra.mxu0 %v1532
    %1811 = vmatprep.subr.bf16.mxu0 %v1638
    %1812 = vmatpush2.bf16.msra.mxu0 %v1637
    %1813 = vmatprep.subr.bf16.mxu0 %v1631
    %1814 = vmatpush2.bf16.msra.mxu0 %v1630
    %1815 = vmatprep.subr.bf16.mxu0 %v1624
    %1816 = vmatpush2.bf16.msra.mxu0 %v1623
    %1817 = vmatprep.subr.bf16.mxu0 %v1617
    %1818 = vmatpush2.bf16.msra.mxu0 %v1616
    %1819 = vmatprep.subr.bf16.mxu0 %v1610
    %1820 = vmatpush2.bf16.msra.mxu0 %v1609
    %1821 = vmatprep.subr.bf16.mxu0 %v1603
    %1822 = vmatpush2.bf16.msra.mxu0 %v1602
    %1823 = vmatprep.subr.bf16.mxu0 %v1596
    %1824 = vmatpush2.bf16.msra.mxu0 %v1595
    %1825 = vmatprep.subr.bf16.mxu0 %v1589
    %1826 = vmatpush2.bf16.msra.mxu0 %v1588
    %1827 = vmatprep.mubr.bf16.mxu0 %v1012
    %1828 = vmatmul.mubr.bf16.gmra.mxu0 %v1011
    %v1829 = vpop.f32.mrf.mxu0
    %v1830 = vadd.f32 %v1154, %v1829
    %v1831 = vpop.f32.mrf.mxu0
    %v1832 = vadd.f32 %v1158, %v1831
    %v1833 = vpop.f32.mrf.mxu0
    %v1834 = vpop.f32.mrf.mxu0
    %1835 = vdwg.mxu0
    %1836 = vmatprep.subr.bf16.mxu0 %v1584
    %1837 = vmatpush1.bf16.msra.mxu0 %v1583
    %1838 = vmatprep.subr.bf16.mxu0 %v1577
    %1839 = vmatpush1.bf16.msra.mxu0 %v1576
    %1840 = vmatprep.subr.bf16.mxu0 %v1570
    %1841 = vmatpush1.bf16.msra.mxu0 %v1569
    %1842 = vmatprep.subr.bf16.mxu0 %v1563
    %1843 = vmatpush1.bf16.msra.mxu0 %v1562
    %1844 = vmatprep.subr.bf16.mxu0 %v1556
    %1845 = vmatpush1.bf16.msra.mxu0 %v1555
    %1846 = vmatprep.subr.bf16.mxu0 %v1549
    %1847 = vmatpush1.bf16.msra.mxu0 %v1548
    %1848 = vmatprep.subr.bf16.mxu0 %v1542
    %1849 = vmatpush1.bf16.msra.mxu0 %v1541
    %1850 = vmatprep.subr.bf16.mxu0 %v1535
    %1851 = vmatpush1.bf16.msra.mxu0 %v1534
    %1852 = vmatprep.subr.bf16.mxu0 %v1640
    %1853 = vmatpush2.bf16.msra.mxu0 %v1639
    %1854 = vmatprep.subr.bf16.mxu0 %v1633
    %1855 = vmatpush2.bf16.msra.mxu0 %v1632
    %1856 = vmatprep.subr.bf16.mxu0 %v1626
    %1857 = vmatpush2.bf16.msra.mxu0 %v1625
    %1858 = vmatprep.subr.bf16.mxu0 %v1619
    %1859 = vmatpush2.bf16.msra.mxu0 %v1618
    %1860 = vmatprep.subr.bf16.mxu0 %v1612
    %1861 = vmatpush2.bf16.msra.mxu0 %v1611
    %1862 = vmatprep.subr.bf16.mxu0 %v1605
    %1863 = vmatpush2.bf16.msra.mxu0 %v1604
    %1864 = vmatprep.subr.bf16.mxu0 %v1598
    %1865 = vmatpush2.bf16.msra.mxu0 %v1597
    %1866 = vmatprep.subr.bf16.mxu0 %v1591
    %1867 = vmatpush2.bf16.msra.mxu0 %v1590
    %1868 = vmatprep.mubr.bf16.mxu0 %v1012
    %1869 = vmatmul.mubr.bf16.gmra.mxu0 %v1011
    %v1870 = vpop.f32.mrf.mxu0
    %v1871 = vadd.f32 %v1162, %v1870
    %v1872 = vpop.f32.mrf.mxu0
    %v1873 = vadd.f32 %v1166, %v1872
    %v1874 = vpop.f32.mrf.mxu0
    %v1875 = vpop.f32.mrf.mxu0
    %1876 = vdwg.mxu0
    %1877 = vmatprep.subr.bf16.mxu0 0
    %1878 = vmatpush1.bf16.msra.mxu0 %v1585
    %1879 = vmatprep.subr.bf16.mxu0 0
    %1880 = vmatpush1.bf16.msra.mxu0 %v1578
    %1881 = vmatprep.subr.bf16.mxu0 0
    %1882 = vmatpush1.bf16.msra.mxu0 %v1571
    %1883 = vmatprep.subr.bf16.mxu0 0
    %1884 = vmatpush1.bf16.msra.mxu0 %v1564
    %1885 = vmatprep.subr.bf16.mxu0 0
    %1886 = vmatpush1.bf16.msra.mxu0 %v1557
    %1887 = vmatprep.subr.bf16.mxu0 0
    %1888 = vmatpush1.bf16.msra.mxu0 %v1550
    %1889 = vmatprep.subr.bf16.mxu0 0
    %1890 = vmatpush1.bf16.msra.mxu0 %v1543
    %1891 = vmatprep.subr.bf16.mxu0 0
    %1892 = vmatpush1.bf16.msra.mxu0 %v1536
    %1893 = vmatprep.subr.bf16.mxu0 0
    %1894 = vmatpush2.bf16.msra.mxu0 %v1641
    %1895 = vmatprep.subr.bf16.mxu0 0
    %1896 = vmatpush2.bf16.msra.mxu0 %v1634
    %1897 = vmatprep.subr.bf16.mxu0 0
    %1898 = vmatpush2.bf16.msra.mxu0 %v1627
    %1899 = vmatprep.subr.bf16.mxu0 0
    %1900 = vmatpush2.bf16.msra.mxu0 %v1620
    %1901 = vmatprep.subr.bf16.mxu0 0
    %1902 = vmatpush2.bf16.msra.mxu0 %v1613
    %1903 = vmatprep.subr.bf16.mxu0 0
    %1904 = vmatpush2.bf16.msra.mxu0 %v1606
    %1905 = vmatprep.subr.bf16.mxu0 0
    %1906 = vmatpush2.bf16.msra.mxu0 %v1599
    %1907 = vmatprep.subr.bf16.mxu0 0
    %1908 = vmatpush2.bf16.msra.mxu0 %v1592
    %1909 = vmatprep.mubr.bf16.mxu0 %v1012
    %1910 = vmatmul.mubr.bf16.gmra.mxu0 %v1011
    %v1911 = vpop.f32.mrf.mxu0
    %v1912 = vadd.f32 %v1170, %v1911
    %v1913 = vpop.f32.mrf.mxu0
    %v1914 = vpop.f32.mrf.mxu0
    %v1915 = vpop.f32.mrf.mxu0
    %1916 = vdwg.mxu0
    %v1917 = vmul.f32 %v1789, 0.5
    %v1918 = vmul.f32 %v1791, 0.5
    %v1919 = vmul.f32 %v1830, 0.5
    %v1920 = vmul.f32 %v1832, 0.5
    %v1921 = vmul.f32 %v1871, 0.5
    %v1922 = vmul.f32 %v1873, 0.5
    %v1923 = vmul.f32 %v1912, 0.5
    %v1924 = vtanh.pop %v1917
    %v1925 = vtanh.pop %v1918
    %v1926 = vtanh.pop %v1919
    %v1927 = vtanh.pop %v1920
    %v1928 = vtanh.pop %v1921
    %v1929 = vtanh.pop %v1922
    %v1930 = vtanh.pop %v1923
    %v1931 = vmul.f32 %v1924, 0.5
    %v1932 = vmul.f32 %v1925, 0.5
    %v1933 = vmul.f32 %v1926, 0.5
    %v1934 = vmul.f32 %v1927, 0.5
    %v1935 = vmul.f32 %v1928, 0.5
    %v1936 = vmul.f32 %v1929, 0.5
    %v1937 = vmul.f32 %v1930, 0.5
    %v1938 = vadd.f32 %v1931, 0.5
    %v1939 = vadd.f32 %v1932, 0.5
    %v1940 = vadd.f32 %v1933, 0.5
    %v1941 = vadd.f32 %v1934, 0.5
    %v1942 = vadd.f32 %v1935, 0.5
    %v1943 = vadd.f32 %v1936, 0.5
    %v1944 = vadd.f32 %v1937, 0.5
    %1945 = vst [vmem:[#allocation2] sm:$0xff] %v1938
    %1946 = vst [vmem:[#allocation2 + $0x8] sm:$0xff] %v1939
    %1947 = vst [vmem:[#allocation2 + $0x10] sm:$0xff] %v1940
    %1948 = vst [vmem:[#allocation2 + $0x18] sm:$0xff] %v1941
    %1949 = vst [vmem:[#allocation2 + $0x20] sm:$0xff] %v1942
    %1950 = vst [vmem:[#allocation2 + $0x28] sm:$0xff] %v1943
    %1951 = vst.msk [vmem:[#allocation2 + $0x30] sm:$0xff] %vm667, %v1944
    %vm1952 = vcmask 31744
    %1953 = vst.msk [vmem:[%s11] sm:$0xff] %vm1952, %v943
    // Predicated region
    $region42: #{tpu_custom_call.1} parent=1 // pred_check
      _
    $region43: #{tpu_custom_call.1} parent=1 // pred_check_branch
      %1955 = sbr.rel (0) target = $region45
    $region44: #{tpu_custom_call.1} parent=1 // pred_region
      %s1957 = ssub.s32 896, 896
      %1958 = vsyncadd [#allocation3], %s1957
      %s1960 = sshll.u32 [#allocation2], 4
      %s1961 = int_to_ptr.vmem [resolvable:$true] %s1960
      %1963 = dma.vmem_to_hbm [thread:$0]  %s1961, 896, %s10, [#allocation3]
    $region45: #{tpu_custom_call.1} parent=1 // pred_fallthru
      _
    // Predicated region
    $region46: #{tpu_custom_call.1} parent=1 // pred_check
      _
    $region47: #{tpu_custom_call.1} parent=1 // pred_check_branch
      %1965 = sbr.rel (0) target = $region49
    $region48: #{tpu_custom_call.1} parent=1 // pred_region
      _
    $region49: #{tpu_custom_call.1} parent=1 // pred_fallthru
      _
    // Predicated region
    $region50: #{tpu_custom_call.1} parent=1 // pred_check
      _
    $region51: #{tpu_custom_call.1} parent=1 // pred_check_branch
      %1967 = sbr.rel (0) target = $region53
    $region52: #{tpu_custom_call.1} parent=1 // pred_region
      %1968 = dma.done [#allocation3], 896
    $region53: #{tpu_custom_call.1} parent=1 // pred_fallthru
      _
    // Predicated region
    $region54: #{tpu_custom_call.1} parent=1 // pred_check
      _
    $region55: #{tpu_custom_call.1} parent=1 // pred_check_branch
      %1970 = sbr.rel (0) target = $region57
    $region56: #{tpu_custom_call.1} parent=1 // pred_region
      _
    $region57: #{tpu_custom_call.1} parent=1 // pred_fallthru
      _
    %1971 = vsyncpa [#allocation3], 1

</llo_original>
